<compile_context>
chip_gen: v7x
topology: tpu7x:2x2x1
jax: 0.10.0
libtpu: 0.0.40
codegen_flags: <defaults>
</compile_context>

<pallas_src>
import functools

import jax
import jax.numpy as jnp
from jax import lax
from jax.experimental import pallas as pl
from jax.experimental.pallas import tpu as pltpu

_COMPUTE_DTYPE = jnp.bfloat16   # MXU operand dtype (2x MXU throughput, 1/2 DMA)


def _round_up(v, m):
    return ((v + m - 1) // m) * m


def _relu6(v):
    return jnp.clip(v, 0.0, 6.0)


# ----------------------------------------------------------------------------
# Fused Pallas kernel: one (batch, L-tile) grid cell computes all 3 branches.
# ----------------------------------------------------------------------------
def _inception_d_kernel(
    TL, W, L,
    x_ref,
    w11_ref, sc11_ref, bi11_ref,
    w12_ref, sc12_ref, bi12_ref,
    w21_ref, sc21_ref, bi21_ref,
    w22_ref, sc22_ref, bi22_ref,
    w23_ref, sc23_ref, bi23_ref,
    o_ref,
    xw_scr, h11_scr, h22_scr,
):
    """x_ref: (Lp, Cin) padded input (resident for the whole batch row).
    o_ref: (TL, C1+C2+Cin) = [branch1 | branch2 | maxpool] for this tile.
    The W = 2*TL+3 window rows [start, start+W) of x_ref cover every tap of
    every branch for the TL outputs of this tile (left/right conv padding is
    already materialised as zero rows by the wrapper)."""
    t = pl.program_id(1)
    start = pl.multiple_of(t * (2 * TL), 8)

    # ---- overlapping input window for this tile ---------------------------
    xw = x_ref[pl.ds(start, W), :]                       # (W, Cin) f32
    xw_scr[0:W, :] = xw                                  # staged for gathers
    xw_b = xw.astype(_COMPUTE_DTYPE)

    def conv_epilogue(acc, sc_ref, bi_ref):              # folded BN + ReLU6
        return _relu6(acc * sc_ref[...] + bi_ref[...])

    # ---- branch 1: 1x1 conv -> k3 stride-2 conv ----------------------------
    h11 = conv_epilogue(
        jnp.dot(xw_b, w11_ref[...], preferred_element_type=jnp.float32),
        sc11_ref, bi11_ref)                              # (W, C1r)
    h11_scr[0:W, :] = h11
    # stride-2 k=3 conv as ONE im2col matmul (gather rows 2j+1+k, k=0..2)
    a12 = jnp.concatenate(
        [h11_scr[pl.ds(1 + k, TL, stride=2), :] for k in range(3)], axis=-1)
    b1 = conv_epilogue(
        jnp.dot(a12.astype(_COMPUTE_DTYPE), w12_ref[...],
                preferred_element_type=jnp.float32),
        sc12_ref, bi12_ref)                              # (TL, C1)

    # ---- branch 2: 1x1 conv -> k3 s1 p1 conv -> k3 stride-2 conv -----------
    h21 = conv_epilogue(
        jnp.dot(xw_b, w21_ref[...], preferred_element_type=jnp.float32),
        sc21_ref, bi21_ref)                              # (W, C2r)
    # zero the rows that are conv zero-padding (padded index 0 or > L), which
    # also neutralises the overhang rows of a partial last tile.
    gidx = start + lax.broadcasted_iota(jnp.int32, (W, 1), 0)
    h21 = jnp.where(jnp.logical_and(gidx >= 1, gidx <= L), h21, 0.0)
    # k=3 stride-1 (padding folded above): one im2col matmul over 2*TL+1 rows
    a22 = jnp.concatenate([h21[k:k + 2 * TL + 1, :] for k in range(3)], axis=-1)
    h22 = conv_epilogue(
        jnp.dot(a22.astype(_COMPUTE_DTYPE), w22_ref[...],
                preferred_element_type=jnp.float32),
        sc22_ref, bi22_ref)                              # (2*TL+1, C2)
    h22_scr[0:2 * TL + 1, :] = h22
    # k=3 stride-2: stride folded via strided gathers (rows 2j+k)
    a23 = jnp.concatenate(
        [h22_scr[pl.ds(k, TL, stride=2), :] for k in range(3)], axis=-1)
    b2 = conv_epilogue(
        jnp.dot(a23.astype(_COMPUTE_DTYPE), w23_ref[...],
                preferred_element_type=jnp.float32),
        sc23_ref, bi23_ref)                              # (TL, C2)

    # ---- branch 3: max pool k=3 stride-2 (rows 2j+1+k of the window) --------
    pool = jnp.maximum(
        jnp.maximum(xw_scr[pl.ds(1, TL, stride=2), :],
                    xw_scr[pl.ds(2, TL, stride=2), :]),
        xw_scr[pl.ds(3, TL, stride=2), :])               # (TL, Cin)

    # ---- single lane-concatenated store -------------------------------------
    o_ref[...] = jnp.concatenate([b1, b2, pool], axis=-1).astype(o_ref.dtype)


# ----------------------------------------------------------------------------
# Wrapper: layout plumbing + grid/BlockSpecs (NCL in, NCL out like PyTorch).
# ----------------------------------------------------------------------------
def inception_d_forward(x_ncl, params, *, tile_l=None):
    N, c_in, L = x_ncl.shape
    L1 = (L - 3) // 2 + 1                        # k=3, stride=2, no-pad length
    c1r = params["b1_1"]["w_cat"].shape[-1]
    c1 = params["b1_2"]["w_cat"].shape[-1]
    c2 = params["b2_3"]["w_cat"].shape[-1]
    c_total = c1 + c2 + c_in

    # Output-length tile: multiple of 8 (sublanes), capped so double-buffered
    # blocks stay far below v7x's 64 MiB VMEM (v5e/v6e have 128 MiB).
    if tile_l is None:
        tile_l = min(_round_up(L1, 8), 256)
    TL = _round_up(tile_l, 8)
    nt = pl.cdiv(L1, TL)
    W = 2 * TL + 3                               # input rows needed per tile
    Lp = 2 * TL * nt + 3                         # padded length covering all windows

    # NCL -> NLC; one zero row on the left (branch-2 conv padding) and zeros on
    # the right (conv padding + overhang of the last, possibly partial, tile).
    x_nlc = jnp.transpose(x_ncl, (0, 2, 1))
    x_pad = jnp.pad(x_nlc, ((0, 0), (1, Lp - (L + 1)), (0, 0)))

    layer_args, layer_specs = [], []
    for name in ("b1_1", "b1_2", "b2_1", "b2_2", "b2_3"):
        p = params[name]
        for arr in (p["w_cat"], p["scale"].reshape(1, -1), p["bias"].reshape(1, -1)):
            layer_args.append(arr)
            layer_specs.append(pl.BlockSpec(arr.shape, lambda n, t: (0, 0)))

    scratch = [
        pltpu.VMEM((2 * TL + 8, c_in), jnp.float32),   # x window
        pltpu.VMEM((2 * TL + 8, c1r), jnp.float32),    # branch1 1x1 activations
        pltpu.VMEM((2 * TL + 8, c2), jnp.float32),     # branch2 middle activations
    ]

    out_nlc = pl.pallas_call(
        functools.partial(_inception_d_kernel, TL, W, L),
        grid=(N, nt),
        in_specs=[pl.BlockSpec((None, Lp, c_in), lambda n, t: (n, 0, 0))]
                 + layer_specs,
        out_specs=pl.BlockSpec((None, TL, c_total), lambda n, t: (n, t, 0)),
        out_shape=jax.ShapeDtypeStruct((N, L1, c_total), jnp.float32),
        scratch_shapes=scratch,
        compiler_params=pltpu.CompilerParams(
            # independent grid cells -> both TensorCores of a v7x chip used
            dimension_semantics=("parallel", "parallel"),
            vmem_limit_bytes=32 * 1024 * 1024,
        ),
    )(x_pad, *layer_args)

    return jnp.transpose(out_nlc, (0, 2, 1))     # single NLC -> NCL transpose


# ----------------------------------------------------------------------------
# Parameter construction (deterministic; BN folded to scale/bias; im2col weights)
# ----------------------------------------------------------------------------
def init_conv_bn(key, cin, cout, k, eps=1e-5):
    ks = jax.random.split(key, 6)
    w_oik = jax.random.normal(ks[0], (cout, cin, k), jnp.float32) * 0.1  # torch layout
    conv_b = jax.random.normal(ks[1], (cout,), jnp.float32) * 0.1
    gamma = 1.0 + 0.1 * jax.random.normal(ks[2], (cout,), jnp.float32)
    beta = 0.1 * jax.random.normal(ks[3], (cout,), jnp.float32)
    r_mean = 0.1 * jax.random.normal(ks[4], (cout,), jnp.float32)
    r_var = jax.random.uniform(ks[5], (cout,), jnp.float32, 0.5, 1.5)
    scale = gamma / jnp.sqrt(r_var + eps)
    bias = beta + (conv_b - r_mean) * scale
    # (Cout, Cin, K) -> (K*Cin, Cout) im2col weight, bf16 for the MXU.
    w_cat = jnp.transpose(w_oik, (2, 1, 0)).reshape(k * cin, cout)
    return {
        "w_oik": w_oik,                              # f32, pure-JAX reference
        "w_cat": w_cat.astype(_COMPUTE_DTYPE),       # kernel weights
        "scale": scale,
        "bias": bias,
    }


def init_inception_d(key, in_ch, c1r, c1, c2r, c2):
    ks = jax.random.split(key, 5)
    return {
        "b1_1": init_conv_bn(ks[0], in_ch, c1r, 1),
        "b1_2": init_conv_bn(ks[1], c1r, c1, 3),
        "b2_1": init_conv_bn(ks[2], in_ch, c2r, 1),
        "b2_2": init_conv_bn(ks[3], c2r, c2, 3),
        "b2_3": init_conv_bn(ks[4], c2, c2, 3),
    }


# ----------------------------------------------------------------------------
# Pure-JAX reference (NCL layout, mirrors the PyTorch module exactly, f32)
# ----------------------------------------------------------------------------
def _ref_conv_bn_relu6(x_ncl, p, *, stride=1, padding=0):
    y = lax.conv_general_dilated(
        x_ncl, p["w_oik"], window_strides=(stride,),
        padding=[(padding, padding)],
        dimension_numbers=("NCH", "OIH", "NCH"))
    y = y * p["scale"][None, :, None] + p["bias"][None, :, None]
    return jnp.clip(y, 0.0, 6.0)


def _ref_maxpool(x_ncl, k=3, s=2):
    return lax.reduce_window(x_ncl, -jnp.inf, lax.max,
                             (1, 1, k), (1, 1, s), "VALID")


def inception_d_reference(x_ncl, params):
    b1 = _ref_conv_bn_relu6(x_ncl, params["b1_1"])
    b1 = _ref_conv_bn_relu6(b1, params["b1_2"], stride=2)
    b2 = _ref_conv_bn_relu6(x_ncl, params["b2_1"])
    b2 = _ref_conv_bn_relu6(b2, params["b2_2"], stride=1, padding=1)
    b2 = _ref_conv_bn_relu6(b2, params["b2_3"], stride=2)
    b3 = _ref_maxpool(x_ncl)
    return jnp.concatenate([b1, b2, b3], axis=1)


# ----------------------------------------------------------------------------
if __name__ == "__main__":
    key = jax.random.PRNGKey(0)
    k_x, k_p = jax.random.split(key)

    # small shapes: batch=2, in_channels=4, length=16
    N, C_in, L = 2, 4, 16
    c1r, c1, c2r, c2 = 8, 16, 8, 16
    x = jax.random.normal(k_x, (N, C_in, L), jnp.float32)

    params = init_inception_d(k_p, C_in, c1r, c1, c2r, c2)

    out = jax.block_until_ready(inception_d_forward(x, params))
    ref = inception_d_reference(x, params)

    expected_len = (L - 3) // 2 + 1
    assert out.shape == (N, c1 + c2 + C_in, expected_len), out.shape
    # bf16 MXU operands -> relaxed tolerance (f32 accumulate + f32 epilogue)
    max_err = float(jnp.max(jnp.abs(out - ref)))
    assert jnp.allclose(out, ref, atol=5e-2, rtol=5e-2), max_err

    print("KERNEL_OK")
</pallas_src>

<mosaic_0001>
module attributes {stable_mosaic.version = 11 : i64} {
  func.func @_inception_d_kernel(%arg0: i32, %arg1: i32, %arg2: memref<1x19x4xf32, #tpu.memory_space<vmem>>, %arg3: memref<4x8xbf16, #tpu.memory_space<vmem>>, %arg4: memref<1x8xf32, #tpu.memory_space<vmem>>, %arg5: memref<1x8xf32, #tpu.memory_space<vmem>>, %arg6: memref<24x16xbf16, #tpu.memory_space<vmem>>, %arg7: memref<1x16xf32, #tpu.memory_space<vmem>>, %arg8: memref<1x16xf32, #tpu.memory_space<vmem>>, %arg9: memref<4x8xbf16, #tpu.memory_space<vmem>>, %arg10: memref<1x8xf32, #tpu.memory_space<vmem>>, %arg11: memref<1x8xf32, #tpu.memory_space<vmem>>, %arg12: memref<24x16xbf16, #tpu.memory_space<vmem>>, %arg13: memref<1x16xf32, #tpu.memory_space<vmem>>, %arg14: memref<1x16xf32, #tpu.memory_space<vmem>>, %arg15: memref<48x16xbf16, #tpu.memory_space<vmem>>, %arg16: memref<1x16xf32, #tpu.memory_space<vmem>>, %arg17: memref<1x16xf32, #tpu.memory_space<vmem>>, %arg18: memref<1x8x36xf32, #tpu.memory_space<vmem>>, %arg19: memref<24x4xf32, #tpu.memory_space<vmem>>, %arg20: memref<24x8xf32, #tpu.memory_space<vmem>>, %arg21: memref<24x16xf32, #tpu.memory_space<vmem>>) attributes {dimension_semantics = [#tpu.dimension_semantics<parallel>, #tpu.dimension_semantics<parallel>], iteration_bounds = array<i64: 2, 1>, scalar_prefetch = 0 : i64, scratch_operands = 3 : i64, tpu.core_type = #tpu.core_type<tc>, window_params = [{transform_indices = @transform_0, window_bounds = array<i64: 1, 19, 4>}, {pipeline_mode = #tpu.pipeline_mode<synchronous>, transform_indices = @transform_1, window_bounds = array<i64: 4, 8>}, {pipeline_mode = #tpu.pipeline_mode<synchronous>, transform_indices = @transform_2, window_bounds = array<i64: 1, 8>}, {pipeline_mode = #tpu.pipeline_mode<synchronous>, transform_indices = @transform_3, window_bounds = array<i64: 1, 8>}, {pipeline_mode = #tpu.pipeline_mode<synchronous>, transform_indices = @transform_4, window_bounds = array<i64: 24, 16>}, {pipeline_mode = #tpu.pipeline_mode<synchronous>, transform_indices = @transform_5, window_bounds = array<i64: 1, 16>}, {pipeline_mode = #tpu.pipeline_mode<synchronous>, transform_indices = @transform_6, window_bounds = array<i64: 1, 16>}, {pipeline_mode = #tpu.pipeline_mode<synchronous>, transform_indices = @transform_7, window_bounds = array<i64: 4, 8>}, {pipeline_mode = #tpu.pipeline_mode<synchronous>, transform_indices = @transform_8, window_bounds = array<i64: 1, 8>}, {pipeline_mode = #tpu.pipeline_mode<synchronous>, transform_indices = @transform_9, window_bounds = array<i64: 1, 8>}, {pipeline_mode = #tpu.pipeline_mode<synchronous>, transform_indices = @transform_10, window_bounds = array<i64: 24, 16>}, {pipeline_mode = #tpu.pipeline_mode<synchronous>, transform_indices = @transform_11, window_bounds = array<i64: 1, 16>}, {pipeline_mode = #tpu.pipeline_mode<synchronous>, transform_indices = @transform_12, window_bounds = array<i64: 1, 16>}, {pipeline_mode = #tpu.pipeline_mode<synchronous>, transform_indices = @transform_13, window_bounds = array<i64: 48, 16>}, {pipeline_mode = #tpu.pipeline_mode<synchronous>, transform_indices = @transform_14, window_bounds = array<i64: 1, 16>}, {pipeline_mode = #tpu.pipeline_mode<synchronous>, transform_indices = @transform_15, window_bounds = array<i64: 1, 16>}, {transform_indices = @transform_16, window_bounds = array<i64: 1, 8, 36>}]} {
    %c16_i32 = arith.constant 16 : i32
    %0 = arith.muli %arg1, %c16_i32 : i32
    %1 = tpu.assume_multiple %0, 8 : i32
    %c0 = arith.constant 0 : index
    %2 = arith.index_cast %1 : i32 to index
    %c0_0 = arith.constant 0 : index
    %3 = vector.load %arg2[%c0, %2, %c0_0] : memref<1x19x4xf32, #tpu.memory_space<vmem>>, vector<1x19x4xf32>
    %4 = vector.shape_cast %3 : vector<1x19x4xf32> to vector<19x4xf32>
    %c0_1 = arith.constant 0 : index
    %c0_2 = arith.constant 0 : index
    %5 = vector.load %arg19[%c0_1, %c0_2] : memref<24x4xf32, #tpu.memory_space<vmem>>, vector<19x4xf32>
    tpu.vector_store %arg19[%c0_1, %c0_2], %4 {strides = array<i32>} : memref<24x4xf32, #tpu.memory_space<vmem>>, vector<19x4xf32>,
    %6 = arith.truncf %4 : vector<19x4xf32> to vector<19x4xbf16>
    %c0_3 = arith.constant 0 : index
    %c0_4 = arith.constant 0 : index
    %7 = vector.load %arg3[%c0_3, %c0_4] : memref<4x8xbf16, #tpu.memory_space<vmem>>, vector<4x8xbf16>
    %cst = arith.constant dense<0.000000e+00> : vector<19x8xf32>
    %8 = tpu.matmul %6, %7, %cst {dimension_numbers = #tpu.dot_dimension_numbers<[1], [0], [0], [1], [0, 0, 1, 1], [], []>} : vector<19x4xbf16>, vector<4x8xbf16>, vector<19x8xf32> -> vector<19x8xf32>
    %c0_5 = arith.constant 0 : index
    %c0_6 = arith.constant 0 : index
    %9 = vector.load %arg4[%c0_5, %c0_6] : memref<1x8xf32, #tpu.memory_space<vmem>>, vector<1x8xf32>
    %10 = vector.broadcast %9 : vector<1x8xf32> to vector<19x8xf32>
    %11 = arith.mulf %8, %10 : vector<19x8xf32>
    %c0_7 = arith.constant 0 : index
    %c0_8 = arith.constant 0 : index
    %12 = vector.load %arg5[%c0_7, %c0_8] : memref<1x8xf32, #tpu.memory_space<vmem>>, vector<1x8xf32>
    %13 = vector.broadcast %12 : vector<1x8xf32> to vector<19x8xf32>
    %14 = arith.addf %11, %13 : vector<19x8xf32>
    %cst_9 = arith.constant 0.000000e+00 : f32
    %cst_10 = arith.constant 6.000000e+00 : f32
    %15 = vector.broadcast %cst_9 : f32 to vector<19x8xf32>
    %16 = arith.maximumf %15, %14 : vector<19x8xf32>
    %17 = vector.broadcast %cst_10 : f32 to vector<19x8xf32>
    %18 = arith.minimumf %17, %16 : vector<19x8xf32>
    %c0_11 = arith.constant 0 : index
    %c0_12 = arith.constant 0 : index
    %19 = vector.load %arg20[%c0_11, %c0_12] : memref<24x8xf32, #tpu.memory_space<vmem>>, vector<19x8xf32>
    tpu.vector_store %arg20[%c0_11, %c0_12], %18 {strides = array<i32>} : memref<24x8xf32, #tpu.memory_space<vmem>>, vector<19x8xf32>,
    %c1 = arith.constant 1 : index
    %c0_13 = arith.constant 0 : index
    %20 = tpu.strided_load %arg20[%c1, %c0_13] {strides = array<i32: 2, 1>} : memref<24x8xf32, #tpu.memory_space<vmem>>, vector<8x8xf32>
    %c2 = arith.constant 2 : index
    %c0_14 = arith.constant 0 : index
    %21 = tpu.strided_load %arg20[%c2, %c0_14] {strides = array<i32: 2, 1>} : memref<24x8xf32, #tpu.memory_space<vmem>>, vector<8x8xf32>
    %c3 = arith.constant 3 : index
    %c0_15 = arith.constant 0 : index
    %22 = tpu.strided_load %arg20[%c3, %c0_15] {strides = array<i32: 2, 1>} : memref<24x8xf32, #tpu.memory_space<vmem>>, vector<8x8xf32>
    %23 = tpu.concatenate %20, %21, %22 in 1 : vector<8x8xf32>, vector<8x8xf32>, vector<8x8xf32> -> vector<8x24xf32>
    %24 = arith.truncf %23 : vector<8x24xf32> to vector<8x24xbf16>
    %c0_16 = arith.constant 0 : index
    %c0_17 = arith.constant 0 : index
    %25 = vector.load %arg6[%c0_16, %c0_17] : memref<24x16xbf16, #tpu.memory_space<vmem>>, vector<24x16xbf16>
    %cst_18 = arith.constant dense<0.000000e+00> : vector<8x16xf32>
    %26 = tpu.matmul %24, %25, %cst_18 {dimension_numbers = #tpu.dot_dimension_numbers<[1], [0], [0], [1], [0, 0, 1, 1], [], []>} : vector<8x24xbf16>, vector<24x16xbf16>, vector<8x16xf32> -> vector<8x16xf32>
    %c0_19 = arith.constant 0 : index
    %c0_20 = arith.constant 0 : index
    %27 = vector.load %arg7[%c0_19, %c0_20] : memref<1x16xf32, #tpu.memory_space<vmem>>, vector<1x16xf32>
    %28 = vector.broadcast %27 : vector<1x16xf32> to vector<8x16xf32>
    %29 = arith.mulf %26, %28 : vector<8x16xf32>
    %c0_21 = arith.constant 0 : index
    %c0_22 = arith.constant 0 : index
    %30 = vector.load %arg8[%c0_21, %c0_22] : memref<1x16xf32, #tpu.memory_space<vmem>>, vector<1x16xf32>
    %31 = vector.broadcast %30 : vector<1x16xf32> to vector<8x16xf32>
    %32 = arith.addf %29, %31 : vector<8x16xf32>
    %cst_23 = arith.constant 0.000000e+00 : f32
    %cst_24 = arith.constant 6.000000e+00 : f32
    %33 = vector.broadcast %cst_23 : f32 to vector<8x16xf32>
    %34 = arith.maximumf %33, %32 : vector<8x16xf32>
    %35 = vector.broadcast %cst_24 : f32 to vector<8x16xf32>
    %36 = arith.minimumf %35, %34 : vector<8x16xf32>
    %c0_25 = arith.constant 0 : index
    %c0_26 = arith.constant 0 : index
    %37 = vector.load %arg9[%c0_25, %c0_26] : memref<4x8xbf16, #tpu.memory_space<vmem>>, vector<4x8xbf16>
    %cst_27 = arith.constant dense<0.000000e+00> : vector<19x8xf32>
    %38 = tpu.matmul %6, %37, %cst_27 {dimension_numbers = #tpu.dot_dimension_numbers<[1], [0], [0], [1], [0, 0, 1, 1], [], []>} : vector<19x4xbf16>, vector<4x8xbf16>, vector<19x8xf32> -> vector<19x8xf32>
    %c0_28 = arith.constant 0 : index
    %c0_29 = arith.constant 0 : index
    %39 = vector.load %arg10[%c0_28, %c0_29] : memref<1x8xf32, #tpu.memory_space<vmem>>, vector<1x8xf32>
    %40 = vector.broadcast %39 : vector<1x8xf32> to vector<19x8xf32>
    %41 = arith.mulf %38, %40 : vector<19x8xf32>
    %c0_30 = arith.constant 0 : index
    %c0_31 = arith.constant 0 : index
    %42 = vector.load %arg11[%c0_30, %c0_31] : memref<1x8xf32, #tpu.memory_space<vmem>>, vector<1x8xf32>
    %43 = vector.broadcast %42 : vector<1x8xf32> to vector<19x8xf32>
    %44 = arith.addf %41, %43 : vector<19x8xf32>
    %cst_32 = arith.constant 0.000000e+00 : f32
    %cst_33 = arith.constant 6.000000e+00 : f32
    %45 = vector.broadcast %cst_32 : f32 to vector<19x8xf32>
    %46 = arith.maximumf %45, %44 : vector<19x8xf32>
    %47 = vector.broadcast %cst_33 : f32 to vector<19x8xf32>
    %48 = arith.minimumf %47, %46 : vector<19x8xf32>
    %49 = tpu.iota {dimensions = array<i32: 0>} : vector<19x1xi32>
    %50 = vector.broadcast %1 : i32 to vector<19x1xi32>
    %51 = arith.addi %50, %49 : vector<19x1xi32>
    %c1_i32 = arith.constant 1 : i32
    %52 = vector.broadcast %c1_i32 : i32 to vector<19x1xi32>
    %53 = arith.cmpi sge, %51, %52 : vector<19x1xi32>
    %c16_i32_34 = arith.constant 16 : i32
    %54 = vector.broadcast %c16_i32_34 : i32 to vector<19x1xi32>
    %55 = arith.cmpi sle, %51, %54 : vector<19x1xi32>
    %56 = arith.andi %53, %55 : vector<19x1xi1>
    %cst_35 = arith.constant 0.000000e+00 : f32
    %57 = vector.shape_cast %56 : vector<19x1xi1> to vector<19x1xi1>
    %58 = vector.broadcast %57 : vector<19x1xi1> to vector<19x8xi1>
    %59 = vector.broadcast %cst_35 : f32 to vector<19x8xf32>
    %60 = arith.select %58, %48, %59 : vector<19x8xi1>, vector<19x8xf32>
    %61 = vector.extract_strided_slice %60 {offsets = [0, 0], sizes = [17, 8], strides = [1, 1]} : vector<19x8xf32> to vector<17x8xf32>
    %62 = vector.extract_strided_slice %60 {offsets = [1, 0], sizes = [17, 8], strides = [1, 1]} : vector<19x8xf32> to vector<17x8xf32>
    %63 = vector.extract_strided_slice %60 {offsets = [2, 0], sizes = [17, 8], strides = [1, 1]} : vector<19x8xf32> to vector<17x8xf32>
    %64 = tpu.concatenate %61, %62, %63 in 1 : vector<17x8xf32>, vector<17x8xf32>, vector<17x8xf32> -> vector<17x24xf32>
    %65 = arith.truncf %64 : vector<17x24xf32> to vector<17x24xbf16>
    %c0_36 = arith.constant 0 : index
    %c0_37 = arith.constant 0 : index
    %66 = vector.load %arg12[%c0_36, %c0_37] : memref<24x16xbf16, #tpu.memory_space<vmem>>, vector<24x16xbf16>
    %cst_38 = arith.constant dense<0.000000e+00> : vector<17x16xf32>
    %67 = tpu.matmul %65, %66, %cst_38 {dimension_numbers = #tpu.dot_dimension_numbers<[1], [0], [0], [1], [0, 0, 1, 1], [], []>} : vector<17x24xbf16>, vector<24x16xbf16>, vector<17x16xf32> -> vector<17x16xf32>
    %c0_39 = arith.constant 0 : index
    %c0_40 = arith.constant 0 : index
    %68 = vector.load %arg13[%c0_39, %c0_40] : memref<1x16xf32, #tpu.memory_space<vmem>>, vector<1x16xf32>
    %69 = vector.broadcast %68 : vector<1x16xf32> to vector<17x16xf32>
    %70 = arith.mulf %67, %69 : vector<17x16xf32>
    %c0_41 = arith.constant 0 : index
    %c0_42 = arith.constant 0 : index
    %71 = vector.load %arg14[%c0_41, %c0_42] : memref<1x16xf32, #tpu.memory_space<vmem>>, vector<1x16xf32>
    %72 = vector.broadcast %71 : vector<1x16xf32> to vector<17x16xf32>
    %73 = arith.addf %70, %72 : vector<17x16xf32>
    %cst_43 = arith.constant 0.000000e+00 : f32
    %cst_44 = arith.constant 6.000000e+00 : f32
    %74 = vector.broadcast %cst_43 : f32 to vector<17x16xf32>
    %75 = arith.maximumf %74, %73 : vector<17x16xf32>
    %76 = vector.broadcast %cst_44 : f32 to vector<17x16xf32>
    %77 = arith.minimumf %76, %75 : vector<17x16xf32>
    %c0_45 = arith.constant 0 : index
    %c0_46 = arith.constant 0 : index
    %78 = vector.load %arg21[%c0_45, %c0_46] : memref<24x16xf32, #tpu.memory_space<vmem>>, vector<17x16xf32>
    tpu.vector_store %arg21[%c0_45, %c0_46], %77 {strides = array<i32>} : memref<24x16xf32, #tpu.memory_space<vmem>>, vector<17x16xf32>,
    %c0_47 = arith.constant 0 : index
    %c0_48 = arith.constant 0 : index
    %79 = tpu.strided_load %arg21[%c0_47, %c0_48] {strides = array<i32: 2, 1>} : memref<24x16xf32, #tpu.memory_space<vmem>>, vector<8x16xf32>
    %c1_49 = arith.constant 1 : index
    %c0_50 = arith.constant 0 : index
    %80 = tpu.strided_load %arg21[%c1_49, %c0_50] {strides = array<i32: 2, 1>} : memref<24x16xf32, #tpu.memory_space<vmem>>, vector<8x16xf32>
    %c2_51 = arith.constant 2 : index
    %c0_52 = arith.constant 0 : index
    %81 = tpu.strided_load %arg21[%c2_51, %c0_52] {strides = array<i32: 2, 1>} : memref<24x16xf32, #tpu.memory_space<vmem>>, vector<8x16xf32>
    %82 = tpu.concatenate %79, %80, %81 in 1 : vector<8x16xf32>, vector<8x16xf32>, vector<8x16xf32> -> vector<8x48xf32>
    %83 = arith.truncf %82 : vector<8x48xf32> to vector<8x48xbf16>
    %c0_53 = arith.constant 0 : index
    %c0_54 = arith.constant 0 : index
    %84 = vector.load %arg15[%c0_53, %c0_54] : memref<48x16xbf16, #tpu.memory_space<vmem>>, vector<48x16xbf16>
    %cst_55 = arith.constant dense<0.000000e+00> : vector<8x16xf32>
    %85 = tpu.matmul %83, %84, %cst_55 {dimension_numbers = #tpu.dot_dimension_numbers<[1], [0], [0], [1], [0, 0, 1, 1], [], []>} : vector<8x48xbf16>, vector<48x16xbf16>, vector<8x16xf32> -> vector<8x16xf32>
    %c0_56 = arith.constant 0 : index
    %c0_57 = arith.constant 0 : index
    %86 = vector.load %arg16[%c0_56, %c0_57] : memref<1x16xf32, #tpu.memory_space<vmem>>, vector<1x16xf32>
    %87 = vector.broadcast %86 : vector<1x16xf32> to vector<8x16xf32>
    %88 = arith.mulf %85, %87 : vector<8x16xf32>
    %c0_58 = arith.constant 0 : index
    %c0_59 = arith.constant 0 : index
    %89 = vector.load %arg17[%c0_58, %c0_59] : memref<1x16xf32, #tpu.memory_space<vmem>>, vector<1x16xf32>
    %90 = vector.broadcast %89 : vector<1x16xf32> to vector<8x16xf32>
    %91 = arith.addf %88, %90 : vector<8x16xf32>
    %cst_60 = arith.constant 0.000000e+00 : f32
    %cst_61 = arith.constant 6.000000e+00 : f32
    %92 = vector.broadcast %cst_60 : f32 to vector<8x16xf32>
    %93 = arith.maximumf %92, %91 : vector<8x16xf32>
    %94 = vector.broadcast %cst_61 : f32 to vector<8x16xf32>
    %95 = arith.minimumf %94, %93 : vector<8x16xf32>
    %c1_62 = arith.constant 1 : index
    %c0_63 = arith.constant 0 : index
    %96 = tpu.strided_load %arg19[%c1_62, %c0_63] {strides = array<i32: 2, 1>} : memref<24x4xf32, #tpu.memory_space<vmem>>, vector<8x4xf32>
    %c2_64 = arith.constant 2 : index
    %c0_65 = arith.constant 0 : index
    %97 = tpu.strided_load %arg19[%c2_64, %c0_65] {strides = array<i32: 2, 1>} : memref<24x4xf32, #tpu.memory_space<vmem>>, vector<8x4xf32>
    %98 = arith.maximumf %96, %97 : vector<8x4xf32>
    %c3_66 = arith.constant 3 : index
    %c0_67 = arith.constant 0 : index
    %99 = tpu.strided_load %arg19[%c3_66, %c0_67] {strides = array<i32: 2, 1>} : memref<24x4xf32, #tpu.memory_space<vmem>>, vector<8x4xf32>
    %100 = arith.maximumf %98, %99 : vector<8x4xf32>
    %101 = tpu.concatenate %36, %95, %100 in 1 : vector<8x16xf32>, vector<8x16xf32>, vector<8x4xf32> -> vector<8x36xf32>
    %c0_68 = arith.constant 0 : index
    %c0_69 = arith.constant 0 : index
    %c0_70 = arith.constant 0 : index
    %102 = vector.load %arg18[%c0_68, %c0_69, %c0_70] : memref<1x8x36xf32, #tpu.memory_space<vmem>>, vector<1x8x36xf32>
    %103 = vector.shape_cast %102 : vector<1x8x36xf32> to vector<8x36xf32>
    %104 = vector.shape_cast %101 : vector<8x36xf32> to vector<1x8x36xf32>
    tpu.vector_store %arg18[%c0_68, %c0_69, %c0_70], %104 {strides = array<i32>} : memref<1x8x36xf32, #tpu.memory_space<vmem>>, vector<1x8x36xf32>,
    return
  }
  func.func @transform_0(%arg0: i32, %arg1: i32) -> (i32, i32, i32) {
    %c0_i32 = arith.constant 0 : i32
    %c0_i32_0 = arith.constant 0 : i32
    %c0_i32_1 = arith.constant 0 : i32
    return %arg0, %c0_i32, %c0_i32_0 : i32, i32, i32
  }
  func.func @transform_1(%arg0: i32, %arg1: i32) -> (i32, i32) {
    %c0_i32 = arith.constant 0 : i32
    %c0_i32_0 = arith.constant 0 : i32
    %c0_i32_1 = arith.constant 0 : i32
    return %c0_i32, %c0_i32_0 : i32, i32
  }
  func.func @transform_2(%arg0: i32, %arg1: i32) -> (i32, i32) {
    %c0_i32 = arith.constant 0 : i32
    %c0_i32_0 = arith.constant 0 : i32
    %c0_i32_1 = arith.constant 0 : i32
    return %c0_i32, %c0_i32_0 : i32, i32
  }
  func.func @transform_3(%arg0: i32, %arg1: i32) -> (i32, i32) {
    %c0_i32 = arith.constant 0 : i32
    %c0_i32_0 = arith.constant 0 : i32
    %c0_i32_1 = arith.constant 0 : i32
    return %c0_i32, %c0_i32_0 : i32, i32
  }
  func.func @transform_4(%arg0: i32, %arg1: i32) -> (i32, i32) {
    %c0_i32 = arith.constant 0 : i32
    %c0_i32_0 = arith.constant 0 : i32
    %c0_i32_1 = arith.constant 0 : i32
    return %c0_i32, %c0_i32_0 : i32, i32
  }
  func.func @transform_5(%arg0: i32, %arg1: i32) -> (i32, i32) {
    %c0_i32 = arith.constant 0 : i32
    %c0_i32_0 = arith.constant 0 : i32
    %c0_i32_1 = arith.constant 0 : i32
    return %c0_i32, %c0_i32_0 : i32, i32
  }
  func.func @transform_6(%arg0: i32, %arg1: i32) -> (i32, i32) {
    %c0_i32 = arith.constant 0 : i32
    %c0_i32_0 = arith.constant 0 : i32
    %c0_i32_1 = arith.constant 0 : i32
    return %c0_i32, %c0_i32_0 : i32, i32
  }
  func.func @transform_7(%arg0: i32, %arg1: i32) -> (i32, i32) {
    %c0_i32 = arith.constant 0 : i32
    %c0_i32_0 = arith.constant 0 : i32
    %c0_i32_1 = arith.constant 0 : i32
    return %c0_i32, %c0_i32_0 : i32, i32
  }
  func.func @transform_8(%arg0: i32, %arg1: i32) -> (i32, i32) {
    %c0_i32 = arith.constant 0 : i32
    %c0_i32_0 = arith.constant 0 : i32
    %c0_i32_1 = arith.constant 0 : i32
    return %c0_i32, %c0_i32_0 : i32, i32
  }
  func.func @transform_9(%arg0: i32, %arg1: i32) -> (i32, i32) {
    %c0_i32 = arith.constant 0 : i32
    %c0_i32_0 = arith.constant 0 : i32
    %c0_i32_1 = arith.constant 0 : i32
    return %c0_i32, %c0_i32_0 : i32, i32
  }
  func.func @transform_10(%arg0: i32, %arg1: i32) -> (i32, i32) {
    %c0_i32 = arith.constant 0 : i32
    %c0_i32_0 = arith.constant 0 : i32
    %c0_i32_1 = arith.constant 0 : i32
    return %c0_i32, %c0_i32_0 : i32, i32
  }
  func.func @transform_11(%arg0: i32, %arg1: i32) -> (i32, i32) {
    %c0_i32 = arith.constant 0 : i32
    %c0_i32_0 = arith.constant 0 : i32
    %c0_i32_1 = arith.constant 0 : i32
    return %c0_i32, %c0_i32_0 : i32, i32
  }
  func.func @transform_12(%arg0: i32, %arg1: i32) -> (i32, i32) {
    %c0_i32 = arith.constant 0 : i32
    %c0_i32_0 = arith.constant 0 : i32
    %c0_i32_1 = arith.constant 0 : i32
    return %c0_i32, %c0_i32_0 : i32, i32
  }
  func.func @transform_13(%arg0: i32, %arg1: i32) -> (i32, i32) {
    %c0_i32 = arith.constant 0 : i32
    %c0_i32_0 = arith.constant 0 : i32
    %c0_i32_1 = arith.constant 0 : i32
    return %c0_i32, %c0_i32_0 : i32, i32
  }
  func.func @transform_14(%arg0: i32, %arg1: i32) -> (i32, i32) {
    %c0_i32 = arith.constant 0 : i32
    %c0_i32_0 = arith.constant 0 : i32
    %c0_i32_1 = arith.constant 0 : i32
    return %c0_i32, %c0_i32_0 : i32, i32
  }
  func.func @transform_15(%arg0: i32, %arg1: i32) -> (i32, i32) {
    %c0_i32 = arith.constant 0 : i32
    %c0_i32_0 = arith.constant 0 : i32
    %c0_i32_1 = arith.constant 0 : i32
    return %c0_i32, %c0_i32_0 : i32, i32
  }
  func.func @transform_16(%arg0: i32, %arg1: i32) -> (i32, i32, i32) {
    %c0_i32 = arith.constant 0 : i32
    %c0_i32_0 = arith.constant 0 : i32
    return %arg0, %arg1, %c0_i32 : i32, i32, i32
  }
}

</mosaic_0001>

<llo_original>
// kernel: tpu_custom_call.1
$region0: #{tpu_custom_call.1}
  #allocation0 [shape = 'u32[]', space=smem, size = 0x4, offset = 0x4, fixed_abs, tag = 'smem constant byte address 0x4 - core index']
  #allocation1 [shape = 'u32[144,128]{1,0:T(1,128)}', space=vmem, size = 0x12000, scoped, tag = 'internal scratch']
  #allocation2 [shape = 'f32[24,4]{1,0:T(8,128)}', space=vmem, size = 0x3000, scoped, tag = 'scratch operand']
  #allocation3 [shape = 'f32[24,8]{1,0:T(8,128)}', space=vmem, size = 0x3000, scoped, tag = 'scratch operand']
  #allocation4 [shape = 'f32[24,16]{1,0:T(8,128)}', space=vmem, size = 0x3000, scoped, tag = 'scratch operand']
  %s0 = inlined_call_operand.vmem [shape: f32[2,19,4], index: 0, kind: input, shape index: {}]
  %s1 = inlined_call_operand.vmem [shape: bf16[4,8], index: 1, kind: input, shape index: {}]
  %s2 = inlined_call_operand.vmem [shape: f32[1,8], index: 2, kind: input, shape index: {}]
  %s3 = inlined_call_operand.vmem [shape: f32[1,8], index: 3, kind: input, shape index: {}]
  %s4 = inlined_call_operand.vmem [shape: bf16[24,16], index: 4, kind: input, shape index: {}]
  %s5 = inlined_call_operand.vmem [shape: f32[1,16], index: 5, kind: input, shape index: {}]
  %s6 = inlined_call_operand.vmem [shape: f32[1,16], index: 6, kind: input, shape index: {}]
  %s7 = inlined_call_operand.vmem [shape: bf16[4,8], index: 7, kind: input, shape index: {}]
  %s8 = inlined_call_operand.vmem [shape: f32[1,8], index: 8, kind: input, shape index: {}]
  %s9 = inlined_call_operand.vmem [shape: f32[1,8], index: 9, kind: input, shape index: {}]
  %s10 = inlined_call_operand.vmem [shape: bf16[24,16], index: 10, kind: input, shape index: {}]
  %s11 = inlined_call_operand.vmem [shape: f32[1,16], index: 11, kind: input, shape index: {}]
  %s12 = inlined_call_operand.vmem [shape: f32[1,16], index: 12, kind: input, shape index: {}]
  %s13 = inlined_call_operand.vmem [shape: bf16[48,16], index: 13, kind: input, shape index: {}]
  %s14 = inlined_call_operand.vmem [shape: f32[1,16], index: 14, kind: input, shape index: {}]
  %s15 = inlined_call_operand.vmem [shape: f32[1,16], index: 15, kind: input, shape index: {}]
  %s16 = inlined_call_operand.vmem [shape: f32[2,7,36], index: 16, kind: output, shape index: {}]
  %s17 = sld [smem:[#allocation0]]
  $region97: #{tpu_custom_call.1} parent=0
    _
  %s19 = ssub.s32 1, %s17
  %s20 = scalar_select 0, %s19, %s17
  loop: start=0, step=1, limit=4
  $region2: #{tpu_custom_call.1} parent=0 // loop_pre_header
    _
  $region3: #{tpu_custom_call.1} parent=0 // loop_header
    %s22 = sphi 0, %s26
    %p23 = scmp.ge.s32.totalorder %s22, 4
    %s29 = sphi 0, %s41
    %s30 = sphi 0, %s37
    %s31 = sphi 0, %s29
    %s32 = sphi 0, %s30
    %s33 = sphi 0, %s31
    %s34 = sphi 0, %s32
    %s44 = sphi 0, %s46
    %s47 = sphi 0, %s44
    %s48 = sphi 0, %s47
    %s64 = sphi 0, %s48
    %s68 = sphi 0, %s68
    %s70 = sphi 0, %s68
    %s71 = sphi 0, %s70
    %s85 = sphi 0, %s71
    %s89 = sphi 0, %s89
    %s91 = sphi 0, %s89
    %s92 = sphi 0, %s91
    %s106 = sphi 0, %s92
    %s110 = sphi 0, %s110
    %s112 = sphi 0, %s110
    %s113 = sphi 0, %s112
    %s127 = sphi 0, %s113
    %s131 = sphi 0, %s131
    %s133 = sphi 0, %s131
    %s134 = sphi 0, %s133
    %s148 = sphi 0, %s134
    %s152 = sphi 0, %s152
    %s154 = sphi 0, %s152
    %s155 = sphi 0, %s154
    %s169 = sphi 0, %s155
    %s173 = sphi 0, %s173
    %s175 = sphi 0, %s173
    %s176 = sphi 0, %s175
    %s190 = sphi 0, %s176
    %s194 = sphi 0, %s194
    %s196 = sphi 0, %s194
    %s197 = sphi 0, %s196
    %s211 = sphi 0, %s197
    %s215 = sphi 0, %s215
    %s217 = sphi 0, %s215
    %s218 = sphi 0, %s217
    %s232 = sphi 0, %s218
    %s236 = sphi 0, %s236
    %s238 = sphi 0, %s236
    %s239 = sphi 0, %s238
    %s253 = sphi 0, %s239
    %s257 = sphi 0, %s257
    %s259 = sphi 0, %s257
    %s260 = sphi 0, %s259
    %s274 = sphi 0, %s260
    %s278 = sphi 0, %s278
    %s280 = sphi 0, %s278
    %s281 = sphi 0, %s280
    %s295 = sphi 0, %s281
    %s299 = sphi 0, %s299
    %s301 = sphi 0, %s299
    %s302 = sphi 0, %s301
    %s316 = sphi 0, %s302
    %s320 = sphi 0, %s320
    %s322 = sphi 0, %s320
    %s323 = sphi 0, %s322
    %s337 = sphi 0, %s323
    %s341 = sphi 0, %s341
    %s343 = sphi 0, %s341
    %s344 = sphi 0, %s343
    %s358 = sphi 0, %s344
    %s362 = sphi 0, %s362
    %s364 = sphi 0, %s362
    %s365 = sphi 0, %s364
    %s379 = sphi 0, %s365
    %s387 = sphi 0, %s389
    %s390 = sphi 0, %s387
    %s391 = sphi 0, %s390
    %s407 = sphi 0, %s391
  $region4: #{tpu_custom_call.1} parent=0 // loop_header_branch
    %25 = sbr.rel (%p23) target = $region8
  $region5: #{tpu_custom_call.1} parent=0 // loop_body
    %s27 = ssub.s32 %s22, 1
    %s28 = ssub.s32 %s22, 2
    %s35 = sadd.s32 1, %s30
    %p36 = scmp.ge.s32.totalorder %s35, 1
    %s37 = scalar_select %p36, 0, %s35
    %s38 = sadd.s32 1, %s29
    %s39 = scalar_select %p36, %s38, %s29
    %p40 = scmp.ge.s32.totalorder %s39, 2
    %s41 = scalar_select %p40, 0, %s39
    %s42 = ssub.s32 %s29, %s41
    %p43 = scmp.eq.s32.totalorder %s42, 0
    %s45 = sadd.s32 %s44, 1
    %s46 = scalar_select %p43, %s44, %s45
    %p49 = pneg %p43
    %p50 = scmp.eq.s32.totalorder %s22, 1
    %p51 = por %p49, %p50
    %p52 = scmp.ne.s32.totalorder %s44, %s47
    %p53 = scmp.eq.s32.totalorder %s22, 0
    %p54 = por %p52, %p53
    %p55 = scmp.ne.s32.totalorder %s44, %s47
    %p56 = scmp.eq.s32.totalorder %s27, 1
    %p57 = por %p55, %p56
    %p58 = scmp.ne.s32.totalorder %s47, %s48
    %p59 = scmp.eq.s32.totalorder %s27, 0
    %p60 = por %p58, %p59
    %p61 = scmp.ne.s32.totalorder %s47, %s48
    %p62 = scmp.eq.s32.totalorder %s28, 1
    %p63 = por %p61, %p62
    %p65 = scmp.ne.s32.totalorder %s48, %s64
    %p66 = scmp.eq.s32.totalorder %s28, 0
    %p67 = por %p65, %p66
    %s69 = sadd.s32 %s68, 1
    %p72 = scmp.eq.s32.totalorder %s22, 1
    %p73 = scmp.ne.s32.totalorder %s68, %s70
    %p74 = scmp.eq.s32.totalorder %s22, 0
    %p75 = por %p73, %p74
    %p76 = scmp.ne.s32.totalorder %s68, %s70
    %p77 = scmp.eq.s32.totalorder %s27, 1
    %p78 = por %p76, %p77
    %p79 = scmp.ne.s32.totalorder %s70, %s71
    %p80 = scmp.eq.s32.totalorder %s27, 0
    %p81 = por %p79, %p80
    %p82 = scmp.ne.s32.totalorder %s70, %s71
    %p83 = scmp.eq.s32.totalorder %s28, 1
    %p84 = por %p82, %p83
    %p86 = scmp.ne.s32.totalorder %s71, %s85
    %p87 = scmp.eq.s32.totalorder %s28, 0
    %p88 = por %p86, %p87
    %s90 = sadd.s32 %s89, 1
    %p93 = scmp.eq.s32.totalorder %s22, 1
    %p94 = scmp.ne.s32.totalorder %s89, %s91
    %p95 = scmp.eq.s32.totalorder %s22, 0
    %p96 = por %p94, %p95
    %p97 = scmp.ne.s32.totalorder %s89, %s91
    %p98 = scmp.eq.s32.totalorder %s27, 1
    %p99 = por %p97, %p98
    %p100 = scmp.ne.s32.totalorder %s91, %s92
    %p101 = scmp.eq.s32.totalorder %s27, 0
    %p102 = por %p100, %p101
    %p103 = scmp.ne.s32.totalorder %s91, %s92
    %p104 = scmp.eq.s32.totalorder %s28, 1
    %p105 = por %p103, %p104
    %p107 = scmp.ne.s32.totalorder %s92, %s106
    %p108 = scmp.eq.s32.totalorder %s28, 0
    %p109 = por %p107, %p108
    %s111 = sadd.s32 %s110, 1
    %p114 = scmp.eq.s32.totalorder %s22, 1
    %p115 = scmp.ne.s32.totalorder %s110, %s112
    %p116 = scmp.eq.s32.totalorder %s22, 0
    %p117 = por %p115, %p116
    %p118 = scmp.ne.s32.totalorder %s110, %s112
    %p119 = scmp.eq.s32.totalorder %s27, 1
    %p120 = por %p118, %p119
    %p121 = scmp.ne.s32.totalorder %s112, %s113
    %p122 = scmp.eq.s32.totalorder %s27, 0
    %p123 = por %p121, %p122
    %p124 = scmp.ne.s32.totalorder %s112, %s113
    %p125 = scmp.eq.s32.totalorder %s28, 1
    %p126 = por %p124, %p125
    %p128 = scmp.ne.s32.totalorder %s113, %s127
    %p129 = scmp.eq.s32.totalorder %s28, 0
    %p130 = por %p128, %p129
    %s132 = sadd.s32 %s131, 1
    %p135 = scmp.eq.s32.totalorder %s22, 1
    %p136 = scmp.ne.s32.totalorder %s131, %s133
    %p137 = scmp.eq.s32.totalorder %s22, 0
    %p138 = por %p136, %p137
    %p139 = scmp.ne.s32.totalorder %s131, %s133
    %p140 = scmp.eq.s32.totalorder %s27, 1
    %p141 = por %p139, %p140
    %p142 = scmp.ne.s32.totalorder %s133, %s134
    %p143 = scmp.eq.s32.totalorder %s27, 0
    %p144 = por %p142, %p143
    %p145 = scmp.ne.s32.totalorder %s133, %s134
    %p146 = scmp.eq.s32.totalorder %s28, 1
    %p147 = por %p145, %p146
    %p149 = scmp.ne.s32.totalorder %s134, %s148
    %p150 = scmp.eq.s32.totalorder %s28, 0
    %p151 = por %p149, %p150
    %s153 = sadd.s32 %s152, 1
    %p156 = scmp.eq.s32.totalorder %s22, 1
    %p157 = scmp.ne.s32.totalorder %s152, %s154
    %p158 = scmp.eq.s32.totalorder %s22, 0
    %p159 = por %p157, %p158
    %p160 = scmp.ne.s32.totalorder %s152, %s154
    %p161 = scmp.eq.s32.totalorder %s27, 1
    %p162 = por %p160, %p161
    %p163 = scmp.ne.s32.totalorder %s154, %s155
    %p164 = scmp.eq.s32.totalorder %s27, 0
    %p165 = por %p163, %p164
    %p166 = scmp.ne.s32.totalorder %s154, %s155
    %p167 = scmp.eq.s32.totalorder %s28, 1
    %p168 = por %p166, %p167
    %p170 = scmp.ne.s32.totalorder %s155, %s169
    %p171 = scmp.eq.s32.totalorder %s28, 0
    %p172 = por %p170, %p171
    %s174 = sadd.s32 %s173, 1
    %p177 = scmp.eq.s32.totalorder %s22, 1
    %p178 = scmp.ne.s32.totalorder %s173, %s175
    %p179 = scmp.eq.s32.totalorder %s22, 0
    %p180 = por %p178, %p179
    %p181 = scmp.ne.s32.totalorder %s173, %s175
    %p182 = scmp.eq.s32.totalorder %s27, 1
    %p183 = por %p181, %p182
    %p184 = scmp.ne.s32.totalorder %s175, %s176
    %p185 = scmp.eq.s32.totalorder %s27, 0
    %p186 = por %p184, %p185
    %p187 = scmp.ne.s32.totalorder %s175, %s176
    %p188 = scmp.eq.s32.totalorder %s28, 1
    %p189 = por %p187, %p188
    %p191 = scmp.ne.s32.totalorder %s176, %s190
    %p192 = scmp.eq.s32.totalorder %s28, 0
    %p193 = por %p191, %p192
    %s195 = sadd.s32 %s194, 1
    %p198 = scmp.eq.s32.totalorder %s22, 1
    %p199 = scmp.ne.s32.totalorder %s194, %s196
    %p200 = scmp.eq.s32.totalorder %s22, 0
    %p201 = por %p199, %p200
    %p202 = scmp.ne.s32.totalorder %s194, %s196
    %p203 = scmp.eq.s32.totalorder %s27, 1
    %p204 = por %p202, %p203
    %p205 = scmp.ne.s32.totalorder %s196, %s197
    %p206 = scmp.eq.s32.totalorder %s27, 0
    %p207 = por %p205, %p206
    %p208 = scmp.ne.s32.totalorder %s196, %s197
    %p209 = scmp.eq.s32.totalorder %s28, 1
    %p210 = por %p208, %p209
    %p212 = scmp.ne.s32.totalorder %s197, %s211
    %p213 = scmp.eq.s32.totalorder %s28, 0
    %p214 = por %p212, %p213
    %s216 = sadd.s32 %s215, 1
    %p219 = scmp.eq.s32.totalorder %s22, 1
    %p220 = scmp.ne.s32.totalorder %s215, %s217
    %p221 = scmp.eq.s32.totalorder %s22, 0
    %p222 = por %p220, %p221
    %p223 = scmp.ne.s32.totalorder %s215, %s217
    %p224 = scmp.eq.s32.totalorder %s27, 1
    %p225 = por %p223, %p224
    %p226 = scmp.ne.s32.totalorder %s217, %s218
    %p227 = scmp.eq.s32.totalorder %s27, 0
    %p228 = por %p226, %p227
    %p229 = scmp.ne.s32.totalorder %s217, %s218
    %p230 = scmp.eq.s32.totalorder %s28, 1
    %p231 = por %p229, %p230
    %p233 = scmp.ne.s32.totalorder %s218, %s232
    %p234 = scmp.eq.s32.totalorder %s28, 0
    %p235 = por %p233, %p234
    %s237 = sadd.s32 %s236, 1
    %p240 = scmp.eq.s32.totalorder %s22, 1
    %p241 = scmp.ne.s32.totalorder %s236, %s238
    %p242 = scmp.eq.s32.totalorder %s22, 0
    %p243 = por %p241, %p242
    %p244 = scmp.ne.s32.totalorder %s236, %s238
    %p245 = scmp.eq.s32.totalorder %s27, 1
    %p246 = por %p244, %p245
    %p247 = scmp.ne.s32.totalorder %s238, %s239
    %p248 = scmp.eq.s32.totalorder %s27, 0
    %p249 = por %p247, %p248
    %p250 = scmp.ne.s32.totalorder %s238, %s239
    %p251 = scmp.eq.s32.totalorder %s28, 1
    %p252 = por %p250, %p251
    %p254 = scmp.ne.s32.totalorder %s239, %s253
    %p255 = scmp.eq.s32.totalorder %s28, 0
    %p256 = por %p254, %p255
    %s258 = sadd.s32 %s257, 1
    %p261 = scmp.eq.s32.totalorder %s22, 1
    %p262 = scmp.ne.s32.totalorder %s257, %s259
    %p263 = scmp.eq.s32.totalorder %s22, 0
    %p264 = por %p262, %p263
    %p265 = scmp.ne.s32.totalorder %s257, %s259
    %p266 = scmp.eq.s32.totalorder %s27, 1
    %p267 = por %p265, %p266
    %p268 = scmp.ne.s32.totalorder %s259, %s260
    %p269 = scmp.eq.s32.totalorder %s27, 0
    %p270 = por %p268, %p269
    %p271 = scmp.ne.s32.totalorder %s259, %s260
    %p272 = scmp.eq.s32.totalorder %s28, 1
    %p273 = por %p271, %p272
    %p275 = scmp.ne.s32.totalorder %s260, %s274
    %p276 = scmp.eq.s32.totalorder %s28, 0
    %p277 = por %p275, %p276
    %s279 = sadd.s32 %s278, 1
    %p282 = scmp.eq.s32.totalorder %s22, 1
    %p283 = scmp.ne.s32.totalorder %s278, %s280
    %p284 = scmp.eq.s32.totalorder %s22, 0
    %p285 = por %p283, %p284
    %p286 = scmp.ne.s32.totalorder %s278, %s280
    %p287 = scmp.eq.s32.totalorder %s27, 1
    %p288 = por %p286, %p287
    %p289 = scmp.ne.s32.totalorder %s280, %s281
    %p290 = scmp.eq.s32.totalorder %s27, 0
    %p291 = por %p289, %p290
    %p292 = scmp.ne.s32.totalorder %s280, %s281
    %p293 = scmp.eq.s32.totalorder %s28, 1
    %p294 = por %p292, %p293
    %p296 = scmp.ne.s32.totalorder %s281, %s295
    %p297 = scmp.eq.s32.totalorder %s28, 0
    %p298 = por %p296, %p297
    %s300 = sadd.s32 %s299, 1
    %p303 = scmp.eq.s32.totalorder %s22, 1
    %p304 = scmp.ne.s32.totalorder %s299, %s301
    %p305 = scmp.eq.s32.totalorder %s22, 0
    %p306 = por %p304, %p305
    %p307 = scmp.ne.s32.totalorder %s299, %s301
    %p308 = scmp.eq.s32.totalorder %s27, 1
    %p309 = por %p307, %p308
    %p310 = scmp.ne.s32.totalorder %s301, %s302
    %p311 = scmp.eq.s32.totalorder %s27, 0
    %p312 = por %p310, %p311
    %p313 = scmp.ne.s32.totalorder %s301, %s302
    %p314 = scmp.eq.s32.totalorder %s28, 1
    %p315 = por %p313, %p314
    %p317 = scmp.ne.s32.totalorder %s302, %s316
    %p318 = scmp.eq.s32.totalorder %s28, 0
    %p319 = por %p317, %p318
    %s321 = sadd.s32 %s320, 1
    %p324 = scmp.eq.s32.totalorder %s22, 1
    %p325 = scmp.ne.s32.totalorder %s320, %s322
    %p326 = scmp.eq.s32.totalorder %s22, 0
    %p327 = por %p325, %p326
    %p328 = scmp.ne.s32.totalorder %s320, %s322
    %p329 = scmp.eq.s32.totalorder %s27, 1
    %p330 = por %p328, %p329
    %p331 = scmp.ne.s32.totalorder %s322, %s323
    %p332 = scmp.eq.s32.totalorder %s27, 0
    %p333 = por %p331, %p332
    %p334 = scmp.ne.s32.totalorder %s322, %s323
    %p335 = scmp.eq.s32.totalorder %s28, 1
    %p336 = por %p334, %p335
    %p338 = scmp.ne.s32.totalorder %s323, %s337
    %p339 = scmp.eq.s32.totalorder %s28, 0
    %p340 = por %p338, %p339
    %s342 = sadd.s32 %s341, 1
    %p345 = scmp.eq.s32.totalorder %s22, 1
    %p346 = scmp.ne.s32.totalorder %s341, %s343
    %p347 = scmp.eq.s32.totalorder %s22, 0
    %p348 = por %p346, %p347
    %p349 = scmp.ne.s32.totalorder %s341, %s343
    %p350 = scmp.eq.s32.totalorder %s27, 1
    %p351 = por %p349, %p350
    %p352 = scmp.ne.s32.totalorder %s343, %s344
    %p353 = scmp.eq.s32.totalorder %s27, 0
    %p354 = por %p352, %p353
    %p355 = scmp.ne.s32.totalorder %s343, %s344
    %p356 = scmp.eq.s32.totalorder %s28, 1
    %p357 = por %p355, %p356
    %p359 = scmp.ne.s32.totalorder %s344, %s358
    %p360 = scmp.eq.s32.totalorder %s28, 0
    %p361 = por %p359, %p360
    %s363 = sadd.s32 %s362, 1
    %p366 = scmp.eq.s32.totalorder %s22, 1
    %p367 = scmp.ne.s32.totalorder %s362, %s364
    %p368 = scmp.eq.s32.totalorder %s22, 0
    %p369 = por %p367, %p368
    %p370 = scmp.ne.s32.totalorder %s362, %s364
    %p371 = scmp.eq.s32.totalorder %s27, 1
    %p372 = por %p370, %p371
    %p373 = scmp.ne.s32.totalorder %s364, %s365
    %p374 = scmp.eq.s32.totalorder %s27, 0
    %p375 = por %p373, %p374
    %p376 = scmp.ne.s32.totalorder %s364, %s365
    %p377 = scmp.eq.s32.totalorder %s28, 1
    %p378 = por %p376, %p377
    %p380 = scmp.ne.s32.totalorder %s365, %s379
    %p381 = scmp.eq.s32.totalorder %s28, 0
    %p382 = por %p380, %p381
    %s383 = ssub.s32 %s29, %s41
    %s384 = ssub.s32 %s30, %s37
    %s385 = sor.u32 %s383, %s384
    %p386 = scmp.eq.s32.totalorder %s385, 0
    %s388 = sadd.s32 %s387, 1
    %s389 = scalar_select %p386, %s387, %s388
    %p392 = pneg %p386
    %p393 = scmp.eq.s32.totalorder %s22, 1
    %p394 = por %p392, %p393
    %p395 = scmp.ne.s32.totalorder %s387, %s390
    %p396 = scmp.eq.s32.totalorder %s22, 0
    %p397 = por %p395, %p396
    %p398 = scmp.ne.s32.totalorder %s387, %s390
    %p399 = scmp.eq.s32.totalorder %s27, 1
    %p400 = por %p398, %p399
    %p401 = scmp.ne.s32.totalorder %s390, %s391
    %p402 = scmp.eq.s32.totalorder %s27, 0
    %p403 = por %p401, %p402
    %p404 = scmp.ne.s32.totalorder %s390, %s391
    %p405 = scmp.eq.s32.totalorder %s28, 1
    %p406 = por %p404, %p405
    %p408 = scmp.ne.s32.totalorder %s391, %s407
    %p409 = scmp.eq.s32.totalorder %s28, 0
    %p410 = por %p408, %p409
    %p411 = scmp.le.s32.totalorder 1, %s22
    %p412 = scmp.lt.s32.totalorder %s22, 3
    %p413 = pnand %p411, %p412
    %p414 = pneg %p413
    // Predicated region
    $region9: #{tpu_custom_call.1} parent=5 // pred_check
      _
    $region10: #{tpu_custom_call.1} parent=5 // pred_check_branch
      %416 = sbr.rel (%p413) target = $region12
    $region11: #{tpu_custom_call.1} parent=5 // pred_region
      %s417 = ssub.s32 %s22, 1
      // Predicated region
      $region13: #{tpu_custom_call.1} parent=11 // pred_check
        %p418 = pneg %p81
      $region14: #{tpu_custom_call.1} parent=11 // pred_check_branch
        %420 = sbr.rel (%p418) target = $region16
      $region15: #{tpu_custom_call.1} parent=11 // pred_region
        _
      $region16: #{tpu_custom_call.1} parent=11 // pred_fallthru
        _
      // Predicated region
      $region17: #{tpu_custom_call.1} parent=11 // pred_check
        %p421 = pneg %p102
      $region18: #{tpu_custom_call.1} parent=11 // pred_check_branch
        %423 = sbr.rel (%p421) target = $region20
      $region19: #{tpu_custom_call.1} parent=11 // pred_region
        _
      $region20: #{tpu_custom_call.1} parent=11 // pred_fallthru
        _
      // Predicated region
      $region21: #{tpu_custom_call.1} parent=11 // pred_check
        %p424 = pneg %p123
      $region22: #{tpu_custom_call.1} parent=11 // pred_check_branch
        %426 = sbr.rel (%p424) target = $region24
      $region23: #{tpu_custom_call.1} parent=11 // pred_region
        _
      $region24: #{tpu_custom_call.1} parent=11 // pred_fallthru
        _
      // Predicated region
      $region25: #{tpu_custom_call.1} parent=11 // pred_check
        %p427 = pneg %p144
      $region26: #{tpu_custom_call.1} parent=11 // pred_check_branch
        %429 = sbr.rel (%p427) target = $region28
      $region27: #{tpu_custom_call.1} parent=11 // pred_region
        _
      $region28: #{tpu_custom_call.1} parent=11 // pred_fallthru
        _
      // Predicated region
      $region29: #{tpu_custom_call.1} parent=11 // pred_check
        %p430 = pneg %p165
      $region30: #{tpu_custom_call.1} parent=11 // pred_check_branch
        %432 = sbr.rel (%p430) target = $region32
      $region31: #{tpu_custom_call.1} parent=11 // pred_region
        _
      $region32: #{tpu_custom_call.1} parent=11 // pred_fallthru
        _
      // Predicated region
      $region33: #{tpu_custom_call.1} parent=11 // pred_check
        %p433 = pneg %p186
      $region34: #{tpu_custom_call.1} parent=11 // pred_check_branch
        %435 = sbr.rel (%p433) target = $region36
      $region35: #{tpu_custom_call.1} parent=11 // pred_region
        _
      $region36: #{tpu_custom_call.1} parent=11 // pred_fallthru
        _
      // Predicated region
      $region37: #{tpu_custom_call.1} parent=11 // pred_check
        %p436 = pneg %p207
      $region38: #{tpu_custom_call.1} parent=11 // pred_check_branch
        %438 = sbr.rel (%p436) target = $region40
      $region39: #{tpu_custom_call.1} parent=11 // pred_region
        _
      $region40: #{tpu_custom_call.1} parent=11 // pred_fallthru
        _
      // Predicated region
      $region41: #{tpu_custom_call.1} parent=11 // pred_check
        %p439 = pneg %p228
      $region42: #{tpu_custom_call.1} parent=11 // pred_check_branch
        %441 = sbr.rel (%p439) target = $region44
      $region43: #{tpu_custom_call.1} parent=11 // pred_region
        _
      $region44: #{tpu_custom_call.1} parent=11 // pred_fallthru
        _
      // Predicated region
      $region45: #{tpu_custom_call.1} parent=11 // pred_check
        %p442 = pneg %p249
      $region46: #{tpu_custom_call.1} parent=11 // pred_check_branch
        %444 = sbr.rel (%p442) target = $region48
      $region47: #{tpu_custom_call.1} parent=11 // pred_region
        _
      $region48: #{tpu_custom_call.1} parent=11 // pred_fallthru
        _
      // Predicated region
      $region49: #{tpu_custom_call.1} parent=11 // pred_check
        %p445 = pneg %p270
      $region50: #{tpu_custom_call.1} parent=11 // pred_check_branch
        %447 = sbr.rel (%p445) target = $region52
      $region51: #{tpu_custom_call.1} parent=11 // pred_region
        _
      $region52: #{tpu_custom_call.1} parent=11 // pred_fallthru
        _
      // Predicated region
      $region53: #{tpu_custom_call.1} parent=11 // pred_check
        %p448 = pneg %p291
      $region54: #{tpu_custom_call.1} parent=11 // pred_check_branch
        %450 = sbr.rel (%p448) target = $region56
      $region55: #{tpu_custom_call.1} parent=11 // pred_region
        _
      $region56: #{tpu_custom_call.1} parent=11 // pred_fallthru
        _
      // Predicated region
      $region57: #{tpu_custom_call.1} parent=11 // pred_check
        %p451 = pneg %p312
      $region58: #{tpu_custom_call.1} parent=11 // pred_check_branch
        %453 = sbr.rel (%p451) target = $region60
      $region59: #{tpu_custom_call.1} parent=11 // pred_region
        _
      $region60: #{tpu_custom_call.1} parent=11 // pred_fallthru
        _
      // Predicated region
      $region61: #{tpu_custom_call.1} parent=11 // pred_check
        %p454 = pneg %p333
      $region62: #{tpu_custom_call.1} parent=11 // pred_check_branch
        %456 = sbr.rel (%p454) target = $region64
      $region63: #{tpu_custom_call.1} parent=11 // pred_region
        _
      $region64: #{tpu_custom_call.1} parent=11 // pred_fallthru
        _
      // Predicated region
      $region65: #{tpu_custom_call.1} parent=11 // pred_check
        %p457 = pneg %p354
      $region66: #{tpu_custom_call.1} parent=11 // pred_check_branch
        %459 = sbr.rel (%p457) target = $region68
      $region67: #{tpu_custom_call.1} parent=11 // pred_region
        _
      $region68: #{tpu_custom_call.1} parent=11 // pred_fallthru
        _
      // Predicated region
      $region69: #{tpu_custom_call.1} parent=11 // pred_check
        %p460 = pneg %p375
      $region70: #{tpu_custom_call.1} parent=11 // pred_check_branch
        %462 = sbr.rel (%p460) target = $region72
      $region71: #{tpu_custom_call.1} parent=11 // pred_region
        _
      $region72: #{tpu_custom_call.1} parent=11 // pred_fallthru
        _
    $region12: #{tpu_custom_call.1} parent=5 // pred_fallthru
      _
    %p463 = scmp.lt.s32.totalorder %s22, 2
    // Predicated region
    $region73: #{tpu_custom_call.1} parent=5 // pred_check
      %p464 = pneg %p463
    $region74: #{tpu_custom_call.1} parent=5 // pred_check_branch
      %466 = sbr.rel (%p464) target = $region76
    $region75: #{tpu_custom_call.1} parent=5 // pred_region
      // Predicated region
      $region77: #{tpu_custom_call.1} parent=75 // pred_check
        %p467 = pneg %p54
      $region78: #{tpu_custom_call.1} parent=75 // pred_check_branch
        %469 = sbr.rel (%p467) target = $region80
      $region79: #{tpu_custom_call.1} parent=75 // pred_region
        %p470 = scmp.lt.s32.totalorder %s29, 1
        %s471 = scalar_select %p470, %s29, 1
        %s472 = smul.addr %s471, 3
        %s473 = smul.addr %s472, 8
        %s474 = scalar_lea.vmem %s0, %s473
      $region80: #{tpu_custom_call.1} parent=75 // pred_fallthru
        _
    $region76: #{tpu_custom_call.1} parent=5 // pred_fallthru
      _
    %p475 = scmp.le.s32.totalorder 1, %s22
    %p476 = scmp.lt.s32.totalorder %s22, 3
    %p477 = pnand %p475, %p476
    %p478 = pneg %p477
    // Predicated region
    $region81: #{tpu_custom_call.1} parent=5 // pred_check
      _
    $region82: #{tpu_custom_call.1} parent=5 // pred_check_branch
      %480 = sbr.rel (%p477) target = $region84
    $region83: #{tpu_custom_call.1} parent=5 // pred_region
      %s481 = ssub.s32 %s22, 1
      %p482 = scmp.lt.s32.totalorder %s31, 1
      %s483 = scalar_select %p482, %s31, 1
      %s484 = smul.addr %s483, 3
      %s485 = smul.addr %s484, 8
      %s486 = scalar_lea.vmem %s0, %s485
      %p487 = pneg %p60
      %p488 = pneg %p57
      %p489 = pneg %p81
      %p490 = pneg %p78
      %p491 = pneg %p102
      %p492 = pneg %p99
      %p493 = pneg %p123
      %p494 = pneg %p120
      %p495 = pneg %p144
      %p496 = pneg %p141
      %p497 = pneg %p165
      %p498 = pneg %p162
      %p499 = pneg %p186
      %p500 = pneg %p183
      %p501 = pneg %p207
      %p502 = pneg %p204
      %p503 = pneg %p228
      %p504 = pneg %p225
      %p505 = pneg %p249
      %p506 = pneg %p246
      %p507 = pneg %p270
      %p508 = pneg %p267
      %p509 = pneg %p291
      %p510 = pneg %p288
      %p511 = pneg %p312
      %p512 = pneg %p309
      %p513 = pneg %p333
      %p514 = pneg %p330
      %p515 = pneg %p354
      %p516 = pneg %p351
      %p517 = pneg %p375
      %p518 = pneg %p372
      %p519 = pneg %p403
      %p520 = pneg %p400
      %p521 = scmp.lt.s32.totalorder %s31, 1
      %s522 = scalar_select %p521, %s31, 1
      %p523 = scmp.lt.s32.totalorder %s32, 0
      %s524 = scalar_select %p523, %s32, 0
      %s525 = sadd.s32 %s524, %s522
      %s526 = smul.addr %s525, 8
      %s527 = scalar_lea.vmem %s16, %s526
      %p528 = scmp.lt.s32.totalorder %s31, 1
      %s529 = scalar_select %p528, %s31, 1
      %s530 = smul.addr %s529, 3
      %s531 = smul.addr %s530, 8
      %s532 = scalar_lea.vmem %s0, %s531
      %p533 = scmp.lt.s32.totalorder %s31, 1
      %s534 = scalar_select %p533, %s31, 1
      %p535 = scmp.lt.s32.totalorder %s32, 0
      %s536 = scalar_select %p535, %s32, 0
      %s537 = sadd.s32 %s536, %s534
      %s538 = smul.addr %s537, 8
      %s539 = scalar_lea.vmem %s16, %s538
      %s541 = smul.u32 %s32, 16
      %s542 = scalar_lea.vmem %s532, %s541
      %v543 = vld [vmem:[%s542] sm:$0xff]
      %v544 = vld [vmem:[%s542 + $0x8] sm:$0xff]
      %v545 = vld [vmem:[%s542 + $0x10] sm:$0x7]
      %vm546 = vcmask 31744
      %547 = vst.msk [vmem:[#allocation2] sm:$0xff] %vm546, %v543
      %548 = vst.msk [vmem:[#allocation2 + $0x8] sm:$0xff] %vm546, %v544
      %vm549 = vcmask 26624
      %550 = vst.msk [vmem:[#allocation2 + $0x10] sm:$0x7] %vm549, %v545
      %v551 = vpack.c.bf16 %v544, %v543
      %v552 = vpack.c.bf16 %v545, %v545
      %v553 = vld [vmem:[%s1] sm:$0x3]
      %v555 = vsel %vm546, %v551, 0
      %v558 = vsel %vm546, %v552, 0
      %vm560 = vcmask 1041408
      %v562 = vsel %vm560, %v553, 0
      %564 = vmatprep.subr.bf16.mxu0 0
      %565 = vmatpush1.bf16.msra.mxu0 %v562
      %566 = vmatprep.subr.bf16.mxu0 0
      %567 = vmatpush1.bf16.msra.mxu0 0
      %568 = vmatprep.subr.bf16.mxu0 0
      %569 = vmatpush1.bf16.msra.mxu0 0
      %570 = vmatprep.subr.bf16.mxu0 0
      %571 = vmatpush1.bf16.msra.mxu0 0
      %572 = vmatprep.subr.bf16.mxu0 0
      %573 = vmatpush1.bf16.msra.mxu0 0
      %574 = vmatprep.subr.bf16.mxu0 0
      %575 = vmatpush1.bf16.msra.mxu0 0
      %576 = vmatprep.subr.bf16.mxu0 0
      %577 = vmatpush1.bf16.msra.mxu0 0
      %578 = vmatprep.subr.bf16.mxu0 0
      %579 = vmatpush1.bf16.msra.mxu0 0
      %580 = vmatprep.subr.bf16.mxu0 0
      %581 = vmatpush1.bf16.msra.mxu0 0
      %582 = vmatprep.subr.bf16.mxu0 0
      %583 = vmatpush1.bf16.msra.mxu0 0
      %584 = vmatprep.subr.bf16.mxu0 0
      %585 = vmatpush1.bf16.msra.mxu0 0
      %586 = vmatprep.subr.bf16.mxu0 0
      %587 = vmatpush1.bf16.msra.mxu0 0
      %588 = vmatprep.subr.bf16.mxu0 0
      %589 = vmatpush1.bf16.msra.mxu0 0
      %590 = vmatprep.subr.bf16.mxu0 0
      %591 = vmatpush1.bf16.msra.mxu0 0
      %592 = vmatprep.subr.bf16.mxu0 0
      %593 = vmatpush1.bf16.msra.mxu0 0
      %594 = vmatprep.subr.bf16.mxu0 0
      %595 = vmatpush1.bf16.msra.mxu0 0
      %596 = vmatprep.mubr.bf16.mxu0 0
      %597 = vmatmul.mubr.bf16.gmra.mrb[0].mxu0 %v555
      %v598 = vpop.f32.mrb[0].mxu0
      %v599 = vadd.f32 0.0, %v598
      %v600 = vpop.f32.mrb[0].mxu0
      %v601 = vpop.f32.mrb[0].mxu0
      %v602 = vadd.f32 0.0, %v601
      %v603 = vpop.f32.mrb[0].mxu0
      %604 = vmatprep.mubr.bf16.mxu0 0
      %605 = vmatmul.mubr.bf16.gmra.mrb[0].mxu0 %v558
      %v606 = vpop.f32.mrb[0].mxu0
      %v607 = vadd.f32 0.0, %v606
      %v608 = vpop.f32.mrb[0].mxu0
      %v609 = vpop.f32.mrb[0].mxu0
      %v610 = vpop.f32.mrb[0].mxu0
      %611 = vdwg.mxu0
      %v612 = vld [vmem:[%s2] sm:$0x1]
      %v614 = vlaneseq
      %v615 = vshrl.u32 %v614, 7
      %v616 = vsub.s32 0, %v615
      %v617 = vrot.slane %v612, %v616
      %v619 = vmul.f32 %v599, %v617
      %v620 = vmul.f32 %v602, %v617
      %v621 = vmul.f32 %v607, %v617
      %v622 = vld [vmem:[%s3] sm:$0x1]
      %v624 = vlaneseq
      %v625 = vshrl.u32 %v624, 7
      %v626 = vsub.s32 0, %v625
      %v627 = vrot.slane %v622, %v626
      %v629 = vadd.f32 %v619, %v627
      %v630 = vadd.f32 %v620, %v627
      %v631 = vadd.f32 %v621, %v627
      %v632 = vmax.f32 %v629, 0.0
      %v633 = vmax.f32 %v630, 0.0
      %v634 = vmax.f32 %v631, 0.0
      %v635 = vmin.f32 %v632, 6.0
      %v636 = vmin.f32 %v633, 6.0
      %v637 = vmin.f32 %v634, 6.0
      %vm638 = vcmask 64512
      %639 = vst.msk [vmem:[#allocation3] sm:$0xff] %vm638, %v635
      %640 = vst.msk [vmem:[#allocation3 + $0x8] sm:$0xff] %vm638, %v636
      %vm641 = vcmask 59392
      %642 = vst.msk [vmem:[#allocation3 + $0x10] sm:$0x7] %vm641, %v637
      %s643 = scalar_lea.vmem [#allocation3], 1
      %v644 = vld [vmem:[%s643] ss:$2 sm:$0xff]
      %s645 = scalar_lea.vmem [#allocation3], 2
      %v646 = vld [vmem:[%s645] ss:$2 sm:$0xff]
      %s647 = scalar_lea.vmem [#allocation3], 3
      %v648 = vld [vmem:[%s647] ss:$2 sm:$0xff]
      %650 = vrot.lane.b32.xlu0 %v646, 8
      %v651 = vpop.permute.xlu0 %650
      %654 = vrot.lane.b32.xlu0 %v648, 16
      %v655 = vpop.permute.xlu0 %654
      %v657 = vsel %vm638, %v644, %v651
      %vm658 = vcmask 130048
      %v659 = vsel %vm658, %v657, %v655
      %v660 = vpack.c.bf16 %v659, %v659
      %v661 = vld [vmem:[%s4] sm:$0xf]
      %v662 = vld [vmem:[%s4 + $0x4] sm:$0xf]
      %v663 = vld [vmem:[%s4 + $0x8] sm:$0xf]
      %v667 = vunpack.c.l.b16 %v661
      %v668 = vunpack.c.l.b16 %v662
      %v669 = vunpack.c.l.b16 %v663
      %v670 = vpack.c.b16 %v668, %v667
      %v671 = vpack.c.b16 %v669, %v669
      %vm673 = vcmask 195584
      %v675 = vsel %vm673, %v660, 0
      %vm677 = vcmask 1043456
      %v679 = vsel %vm677, %v671, 0
      %681 = vmatprep.subr.bf16.mxu0 0
      %682 = vmatpush1.bf16.msra.mxu0 %v670
      %683 = vmatprep.subr.bf16.mxu0 0
      %684 = vmatpush1.bf16.msra.mxu0 %v679
      %685 = vmatprep.subr.bf16.mxu0 0
      %686 = vmatpush1.bf16.msra.mxu0 0
      %687 = vmatprep.subr.bf16.mxu0 0
      %688 = vmatpush1.bf16.msra.mxu0 0
      %689 = vmatprep.subr.bf16.mxu0 0
      %690 = vmatpush1.bf16.msra.mxu0 0
      %691 = vmatprep.subr.bf16.mxu0 0
      %692 = vmatpush1.bf16.msra.mxu0 0
      %693 = vmatprep.subr.bf16.mxu0 0
      %694 = vmatpush1.bf16.msra.mxu0 0
      %695 = vmatprep.subr.bf16.mxu0 0
      %696 = vmatpush1.bf16.msra.mxu0 0
      %697 = vmatprep.subr.bf16.mxu0 0
      %698 = vmatpush1.bf16.msra.mxu0 0
      %699 = vmatprep.subr.bf16.mxu0 0
      %700 = vmatpush1.bf16.msra.mxu0 0
      %701 = vmatprep.subr.bf16.mxu0 0
      %702 = vmatpush1.bf16.msra.mxu0 0
      %703 = vmatprep.subr.bf16.mxu0 0
      %704 = vmatpush1.bf16.msra.mxu0 0
      %705 = vmatprep.subr.bf16.mxu0 0
      %706 = vmatpush1.bf16.msra.mxu0 0
      %707 = vmatprep.subr.bf16.mxu0 0
      %708 = vmatpush1.bf16.msra.mxu0 0
      %709 = vmatprep.subr.bf16.mxu0 0
      %710 = vmatpush1.bf16.msra.mxu0 0
      %711 = vmatprep.subr.bf16.mxu0 0
      %712 = vmatpush1.bf16.msra.mxu0 0
      %713 = vmatprep.mubr.bf16.mxu0 0
      %714 = vmatmul.mubr.bf16.gmra.mrb[0].mxu0 %v675
      %v715 = vpop.f32.mrb[0].mxu0
      %v716 = vadd.f32 0.0, %v715
      %v717 = vpop.f32.mrb[0].mxu0
      %v718 = vpop.f32.mrb[0].mxu0
      %v719 = vpop.f32.mrb[0].mxu0
      %720 = vdwg.mxu0
      %v721 = vld [vmem:[%s5] sm:$0x1]
      %v723 = vlaneseq
      %v724 = vshrl.u32 %v723, 7
      %v725 = vsub.s32 0, %v724
      %v726 = vrot.slane %v721, %v725
      %v728 = vmul.f32 %v716, %v726
      %v729 = vld [vmem:[%s6] sm:$0x1]
      %v731 = vlaneseq
      %v732 = vshrl.u32 %v731, 7
      %v733 = vsub.s32 0, %v732
      %v734 = vrot.slane %v729, %v733
      %v736 = vadd.f32 %v728, %v734
      %v737 = vmax.f32 %v736, 0.0
      %v738 = vmin.f32 %v737, 6.0
      %v739 = vld [vmem:[%s7] sm:$0x3]
      %v741 = vsel %vm560, %v739, 0
      %743 = vmatprep.subr.bf16.mxu0 0
      %744 = vmatpush1.bf16.msra.mxu0 %v741
      %745 = vmatprep.subr.bf16.mxu0 0
      %746 = vmatpush1.bf16.msra.mxu0 0
      %747 = vmatprep.subr.bf16.mxu0 0
      %748 = vmatpush1.bf16.msra.mxu0 0
      %749 = vmatprep.subr.bf16.mxu0 0
      %750 = vmatpush1.bf16.msra.mxu0 0
      %751 = vmatprep.subr.bf16.mxu0 0
      %752 = vmatpush1.bf16.msra.mxu0 0
      %753 = vmatprep.subr.bf16.mxu0 0
      %754 = vmatpush1.bf16.msra.mxu0 0
      %755 = vmatprep.subr.bf16.mxu0 0
      %756 = vmatpush1.bf16.msra.mxu0 0
      %757 = vmatprep.subr.bf16.mxu0 0
      %758 = vmatpush1.bf16.msra.mxu0 0
      %759 = vmatprep.subr.bf16.mxu0 0
      %760 = vmatpush1.bf16.msra.mxu0 0
      %761 = vmatprep.subr.bf16.mxu0 0
      %762 = vmatpush1.bf16.msra.mxu0 0
      %763 = vmatprep.subr.bf16.mxu0 0
      %764 = vmatpush1.bf16.msra.mxu0 0
      %765 = vmatprep.subr.bf16.mxu0 0
      %766 = vmatpush1.bf16.msra.mxu0 0
      %767 = vmatprep.subr.bf16.mxu0 0
      %768 = vmatpush1.bf16.msra.mxu0 0
      %769 = vmatprep.subr.bf16.mxu0 0
      %770 = vmatpush1.bf16.msra.mxu0 0
      %771 = vmatprep.subr.bf16.mxu0 0
      %772 = vmatpush1.bf16.msra.mxu0 0
      %773 = vmatprep.subr.bf16.mxu0 0
      %774 = vmatpush1.bf16.msra.mxu0 0
      %775 = vmatprep.mubr.bf16.mxu0 0
      %776 = vmatmul.mubr.bf16.gmra.mrb[0].mxu0 %v555
      %v777 = vpop.f32.mrb[0].mxu0
      %v778 = vadd.f32 0.0, %v777
      %v779 = vpop.f32.mrb[0].mxu0
      %v780 = vpop.f32.mrb[0].mxu0
      %v781 = vadd.f32 0.0, %v780
      %v782 = vpop.f32.mrb[0].mxu0
      %783 = vmatprep.mubr.bf16.mxu0 0
      %784 = vmatmul.mubr.bf16.gmra.mrb[0].mxu0 %v558
      %v785 = vpop.f32.mrb[0].mxu0
      %v786 = vadd.f32 0.0, %v785
      %v787 = vpop.f32.mrb[0].mxu0
      %v788 = vpop.f32.mrb[0].mxu0
      %v789 = vpop.f32.mrb[0].mxu0
      %790 = vdwg.mxu0
      %v791 = vld [vmem:[%s8] sm:$0x1]
      %v793 = vlaneseq
      %v794 = vshrl.u32 %v793, 7
      %v795 = vsub.s32 0, %v794
      %v796 = vrot.slane %v791, %v795
      %v798 = vmul.f32 %v778, %v796
      %v799 = vmul.f32 %v781, %v796
      %v800 = vmul.f32 %v786, %v796
      %v801 = vld [vmem:[%s9] sm:$0x1]
      %v803 = vlaneseq
      %v804 = vshrl.u32 %v803, 7
      %v805 = vsub.s32 0, %v804
      %v806 = vrot.slane %v801, %v805
      %v808 = vadd.f32 %v798, %v806
      %v809 = vadd.f32 %v799, %v806
      %v810 = vadd.f32 %v800, %v806
      %v811 = vmax.f32 %v808, 0.0
      %v812 = vmax.f32 %v809, 0.0
      %v813 = vmax.f32 %v810, 0.0
      %v814 = vmin.f32 %v811, 6.0
      %v815 = vmin.f32 %v812, 6.0
      %v816 = vmin.f32 %v813, 6.0
      %v817 = vlaneseq
      %v818 = vshrl.u32 %v817, 7
      %v819 = vadd.s32 %v818, 8
      %v820 = vadd.s32 %v818, 16
      %v821 = vstv %s541
      %v822 = vadd.s32 %v821, %v818
      %v823 = vadd.s32 %v821, %v819
      %v824 = vadd.s32 %v821, %v820
      %vm825 = vcmp.ge.s32.totalorder %v822, 1
      %vm826 = vcmp.ge.s32.totalorder %v823, 1
      %vm827 = vcmp.ge.s32.totalorder %v824, 1
      %vm828 = vcmp.le.s32.totalorder %v822, 16
      %vm829 = vcmp.le.s32.totalorder %v823, 16
      %vm830 = vcmp.le.s32.totalorder %v824, 16
      %vm831 = vmand %vm825, %vm828
      %vm832 = vmand %vm826, %vm829
      %vm833 = vmand %vm827, %vm830
      %v834 = vsel %vm831, 1, 0
      %v835 = vsel %vm832, 1, 0
      %v836 = vsel %vm833, 1, 0
      %vm837 = vcmp.eq.s32.totalorder %v834, 1
      %vm838 = vcmp.eq.s32.totalorder %v835, 1
      %vm839 = vcmp.eq.s32.totalorder %v836, 1
      %v840 = vsel %vm837, %v814, 0.0
      %v841 = vsel %vm838, %v815, 0.0
      %v842 = vsel %vm839, %v816, 0.0
      %vm846 = vcmask 1046528
      %v847 = vrot.slane %v840, 1
      %v848 = vrot.slane %v841, 1
      %v849 = vsel %vm846, %v847, %v848
      %v850 = vrot.slane %v842, 1
      %v851 = vsel %vm846, %v848, %v850
      %852 = vrot.lane.b32.xlu0 %v849, 8
      %v853 = vpop.permute.xlu0 %852
      %854 = vrot.lane.b32.xlu0 %v851, 8
      %v855 = vpop.permute.xlu0 %854
      %856 = vrot.lane.b32.xlu0 %v850, 8
      %v857 = vpop.permute.xlu0 %856
      %vm861 = vcmask 1045504
      %v862 = vrot.slane %v840, 2
      %v863 = vrot.slane %v841, 2
      %v864 = vsel %vm861, %v862, %v863
      %v865 = vrot.slane %v842, 2
      %v866 = vsel %vm861, %v863, %v865
      %867 = vrot.lane.b32.xlu0 %v864, 16
      %v868 = vpop.permute.xlu0 %867
      %869 = vrot.lane.b32.xlu0 %v866, 16
      %v870 = vpop.permute.xlu0 %869
      %871 = vrot.lane.b32.xlu0 %v865, 16
      %v872 = vpop.permute.xlu0 %871
      %v876 = vsel %vm638, %v840, %v853
      %v877 = vsel %vm638, %v841, %v855
      %v878 = vsel %vm638, %v842, %v857
      %v879 = vsel %vm658, %v876, %v868
      %v880 = vsel %vm658, %v877, %v870
      %v881 = vsel %vm658, %v878, %v872
      %v882 = vpack.c.bf16 %v880, %v879
      %v883 = vpack.c.bf16 %v881, %v881
      %v884 = vld [vmem:[%s10] sm:$0xf]
      %v885 = vld [vmem:[%s10 + $0x4] sm:$0xf]
      %v886 = vld [vmem:[%s10 + $0x8] sm:$0xf]
      %v890 = vunpack.c.l.b16 %v884
      %v891 = vunpack.c.l.b16 %v885
      %v892 = vunpack.c.l.b16 %v886
      %v893 = vpack.c.b16 %v891, %v890
      %v894 = vpack.c.b16 %v892, %v892
      %v897 = vsel %vm673, %v882, 0
      %v900 = vsel %vm673, %v883, 0
      %v903 = vsel %vm677, %v894, 0
      %905 = vmatprep.subr.bf16.mxu0 0
      %906 = vmatpush1.bf16.msra.mxu0 %v893
      %907 = vmatprep.subr.bf16.mxu0 0
      %908 = vmatpush1.bf16.msra.mxu0 %v903
      %909 = vmatprep.subr.bf16.mxu0 0
      %910 = vmatpush1.bf16.msra.mxu0 0
      %911 = vmatprep.subr.bf16.mxu0 0
      %912 = vmatpush1.bf16.msra.mxu0 0
      %913 = vmatprep.subr.bf16.mxu0 0
      %914 = vmatpush1.bf16.msra.mxu0 0
      %915 = vmatprep.subr.bf16.mxu0 0
      %916 = vmatpush1.bf16.msra.mxu0 0
      %917 = vmatprep.subr.bf16.mxu0 0
      %918 = vmatpush1.bf16.msra.mxu0 0
      %919 = vmatprep.subr.bf16.mxu0 0
      %920 = vmatpush1.bf16.msra.mxu0 0
      %921 = vmatprep.subr.bf16.mxu0 0
      %922 = vmatpush1.bf16.msra.mxu0 0
      %923 = vmatprep.subr.bf16.mxu0 0
      %924 = vmatpush1.bf16.msra.mxu0 0
      %925 = vmatprep.subr.bf16.mxu0 0
      %926 = vmatpush1.bf16.msra.mxu0 0
      %927 = vmatprep.subr.bf16.mxu0 0
      %928 = vmatpush1.bf16.msra.mxu0 0
      %929 = vmatprep.subr.bf16.mxu0 0
      %930 = vmatpush1.bf16.msra.mxu0 0
      %931 = vmatprep.subr.bf16.mxu0 0
      %932 = vmatpush1.bf16.msra.mxu0 0
      %933 = vmatprep.subr.bf16.mxu0 0
      %934 = vmatpush1.bf16.msra.mxu0 0
      %935 = vmatprep.subr.bf16.mxu0 0
      %936 = vmatpush1.bf16.msra.mxu0 0
      %937 = vmatprep.mubr.bf16.mxu0 0
      %938 = vmatmul.mubr.bf16.gmra.mrb[0].mxu0 %v897
      %v939 = vpop.f32.mrb[0].mxu0
      %v940 = vadd.f32 0.0, %v939
      %v941 = vpop.f32.mrb[0].mxu0
      %v942 = vpop.f32.mrb[0].mxu0
      %v943 = vadd.f32 0.0, %v942
      %v944 = vpop.f32.mrb[0].mxu0
      %945 = vmatprep.mubr.bf16.mxu0 0
      %946 = vmatmul.mubr.bf16.gmra.mrb[0].mxu0 %v900
      %v947 = vpop.f32.mrb[0].mxu0
      %v948 = vadd.f32 0.0, %v947
      %v949 = vpop.f32.mrb[0].mxu0
      %v950 = vpop.f32.mrb[0].mxu0
      %v951 = vpop.f32.mrb[0].mxu0
      %952 = vdwg.mxu0
      %v953 = vld [vmem:[%s11] sm:$0x1]
      %v955 = vlaneseq
      %v956 = vshrl.u32 %v955, 7
      %v957 = vsub.s32 0, %v956
      %v958 = vrot.slane %v953, %v957
      %v960 = vmul.f32 %v940, %v958
      %v961 = vmul.f32 %v943, %v958
      %v962 = vmul.f32 %v948, %v958
      %v963 = vld [vmem:[%s12] sm:$0x1]
      %v965 = vlaneseq
      %v966 = vshrl.u32 %v965, 7
      %v967 = vsub.s32 0, %v966
      %v968 = vrot.slane %v963, %v967
      %v970 = vadd.f32 %v960, %v968
      %v971 = vadd.f32 %v961, %v968
      %v972 = vadd.f32 %v962, %v968
      %v973 = vmax.f32 %v970, 0.0
      %v974 = vmax.f32 %v971, 0.0
      %v975 = vmax.f32 %v972, 0.0
      %v976 = vmin.f32 %v973, 6.0
      %v977 = vmin.f32 %v974, 6.0
      %v978 = vmin.f32 %v975, 6.0
      %979 = vst.msk [vmem:[#allocation4] sm:$0xff] %vm658, %v976
      %980 = vst.msk [vmem:[#allocation4 + $0x8] sm:$0xff] %vm658, %v977
      %vm981 = vcmask 122880
      %982 = vst.msk [vmem:[#allocation4 + $0x10] sm:$0x1] %vm981, %v978
      %v983 = vld [vmem:[#allocation4] ss:$2 sm:$0xff]
      %s984 = scalar_lea.vmem [#allocation4], 1
      %v985 = vld [vmem:[%s984] ss:$2 sm:$0xff]
      %s986 = scalar_lea.vmem [#allocation4], 2
      %v987 = vld [vmem:[%s986] ss:$2 sm:$0xff]
      %989 = vrot.lane.b32.xlu0 %v985, 16
      %v990 = vpop.permute.xlu0 %989
      %993 = vrot.lane.b32.xlu0 %v987, 32
      %v994 = vpop.permute.xlu0 %993
      %v996 = vsel %vm658, %v983, %v990
      %vm997 = vcmask 261120
      %v998 = vsel %vm997, %v996, %v994
      %v999 = vpack.c.bf16 %v998, %v998
      %v1000 = vld [vmem:[%s13] sm:$0xf]
      %v1001 = vld [vmem:[%s13 + $0x4] sm:$0xf]
      %v1002 = vld [vmem:[%s13 + $0x8] sm:$0xf]
      %v1003 = vld [vmem:[%s13 + $0xc] sm:$0xf]
      %v1004 = vld [vmem:[%s13 + $0x10] sm:$0xf]
      %v1005 = vld [vmem:[%s13 + $0x14] sm:$0xf]
      %v1012 = vunpack.c.l.b16 %v1000
      %v1013 = vunpack.c.l.b16 %v1001
      %v1014 = vunpack.c.l.b16 %v1002
      %v1015 = vunpack.c.l.b16 %v1003
      %v1016 = vunpack.c.l.b16 %v1004
      %v1017 = vunpack.c.l.b16 %v1005
      %v1018 = vpack.c.b16 %v1013, %v1012
      %v1019 = vpack.c.b16 %v1015, %v1014
      %v1020 = vpack.c.b16 %v1017, %v1016
      %vm1024 = vcmask 392192
      %v1026 = vsel %vm1024, %v999, 0
      %1028 = vmatprep.subr.bf16.mxu0 0
      %1029 = vmatpush1.bf16.msra.mxu0 %v1018
      %1030 = vmatprep.subr.bf16.mxu0 0
      %1031 = vmatpush1.bf16.msra.mxu0 %v1019
      %1032 = vmatprep.subr.bf16.mxu0 0
      %1033 = vmatpush1.bf16.msra.mxu0 %v1020
      %1034 = vmatprep.subr.bf16.mxu0 0
      %1035 = vmatpush1.bf16.msra.mxu0 0
      %1036 = vmatprep.subr.bf16.mxu0 0
      %1037 = vmatpush1.bf16.msra.mxu0 0
      %1038 = vmatprep.subr.bf16.mxu0 0
      %1039 = vmatpush1.bf16.msra.mxu0 0
      %1040 = vmatprep.subr.bf16.mxu0 0
      %1041 = vmatpush1.bf16.msra.mxu0 0
      %1042 = vmatprep.subr.bf16.mxu0 0
      %1043 = vmatpush1.bf16.msra.mxu0 0
      %1044 = vmatprep.subr.bf16.mxu0 0
      %1045 = vmatpush1.bf16.msra.mxu0 0
      %1046 = vmatprep.subr.bf16.mxu0 0
      %1047 = vmatpush1.bf16.msra.mxu0 0
      %1048 = vmatprep.subr.bf16.mxu0 0
      %1049 = vmatpush1.bf16.msra.mxu0 0
      %1050 = vmatprep.subr.bf16.mxu0 0
      %1051 = vmatpush1.bf16.msra.mxu0 0
      %1052 = vmatprep.subr.bf16.mxu0 0
      %1053 = vmatpush1.bf16.msra.mxu0 0
      %1054 = vmatprep.subr.bf16.mxu0 0
      %1055 = vmatpush1.bf16.msra.mxu0 0
      %1056 = vmatprep.subr.bf16.mxu0 0
      %1057 = vmatpush1.bf16.msra.mxu0 0
      %1058 = vmatprep.subr.bf16.mxu0 0
      %1059 = vmatpush1.bf16.msra.mxu0 0
      %1060 = vmatprep.mubr.bf16.mxu0 0
      %1061 = vmatmul.mubr.bf16.gmra.mrb[0].mxu0 %v1026
      %v1062 = vpop.f32.mrb[0].mxu0
      %v1063 = vadd.f32 0.0, %v1062
      %v1064 = vpop.f32.mrb[0].mxu0
      %v1065 = vpop.f32.mrb[0].mxu0
      %v1066 = vpop.f32.mrb[0].mxu0
      %1067 = vdwg.mxu0
      %v1068 = vld [vmem:[%s14] sm:$0x1]
      %v1070 = vlaneseq
      %v1071 = vshrl.u32 %v1070, 7
      %v1072 = vsub.s32 0, %v1071
      %v1073 = vrot.slane %v1068, %v1072
      %v1075 = vmul.f32 %v1063, %v1073
      %v1076 = vld [vmem:[%s15] sm:$0x1]
      %v1078 = vlaneseq
      %v1079 = vshrl.u32 %v1078, 7
      %v1080 = vsub.s32 0, %v1079
      %v1081 = vrot.slane %v1076, %v1080
      %v1083 = vadd.f32 %v1075, %v1081
      %v1084 = vmax.f32 %v1083, 0.0
      %v1085 = vmin.f32 %v1084, 6.0
      %s1086 = scalar_lea.vmem [#allocation2], 1
      %v1087 = vld [vmem:[%s1086] ss:$2 sm:$0xff]
      %s1088 = scalar_lea.vmem [#allocation2], 2
      %v1089 = vld [vmem:[%s1088] ss:$2 sm:$0xff]
      %v1090 = vmax.f32 %v1087, %v1089
      %s1091 = scalar_lea.vmem [#allocation2], 3
      %v1092 = vld [vmem:[%s1091] ss:$2 sm:$0xff]
      %v1093 = vmax.f32 %v1090, %v1092
      %1095 = vrot.lane.b32.xlu0 %v1085, 16
      %v1096 = vpop.permute.xlu0 %1095
      %1099 = vrot.lane.b32.xlu0 %v1093, 32
      %v1100 = vpop.permute.xlu0 %1099
      %v1102 = vsel %vm658, %v738, %v1096
      %v1103 = vsel %vm997, %v1102, %v1100
      %vm1104 = vcmask 293888
      %1105 = vst.msk [vmem:[%s539] sm:$0xff] %vm1104, %v1103
      %p1106 = scmp.lt.s32.totalorder %s31, 1
      %s1107 = scalar_select %p1106, %s31, 1
      %p1108 = scmp.lt.s32.totalorder %s32, 0
      %s1109 = scalar_select %p1108, %s32, 0
      %s1110 = sadd.s32 %s1109, %s1107
      %s1111 = smul.addr %s1110, 8
      %s1112 = scalar_lea.vmem %s16, %s1111
      // Predicated region
      $region85: #{tpu_custom_call.1} parent=83 // pred_check
        %p1113 = pneg %p400
      $region86: #{tpu_custom_call.1} parent=83 // pred_check_branch
        %1115 = sbr.rel (%p1113) target = $region88
      $region87: #{tpu_custom_call.1} parent=83 // pred_region
        _
      $region88: #{tpu_custom_call.1} parent=83 // pred_fallthru
        _
    $region84: #{tpu_custom_call.1} parent=5 // pred_fallthru
      _
    %p1116 = scmp.le.s32.totalorder 2, %s22
    // Predicated region
    $region89: #{tpu_custom_call.1} parent=5 // pred_check
      %p1117 = pneg %p1116
    $region90: #{tpu_custom_call.1} parent=5 // pred_check_branch
      %1119 = sbr.rel (%p1117) target = $region92
    $region91: #{tpu_custom_call.1} parent=5 // pred_region
      %s1120 = ssub.s32 %s22, 2
      // Predicated region
      $region93: #{tpu_custom_call.1} parent=91 // pred_check
        %p1121 = pneg %p406
      $region94: #{tpu_custom_call.1} parent=91 // pred_check_branch
        %1123 = sbr.rel (%p1121) target = $region96
      $region95: #{tpu_custom_call.1} parent=91 // pred_region
        %p1124 = scmp.lt.s32.totalorder %s33, 1
        %s1125 = scalar_select %p1124, %s33, 1
        %p1126 = scmp.lt.s32.totalorder %s34, 0
        %s1127 = scalar_select %p1126, %s34, 0
        %s1128 = sadd.s32 %s1127, %s1125
        %s1129 = smul.addr %s1128, 8
        %s1130 = scalar_lea.vmem %s16, %s1129
      $region96: #{tpu_custom_call.1} parent=91 // pred_fallthru
        _
    $region92: #{tpu_custom_call.1} parent=5 // pred_fallthru
      _
  $region6: #{tpu_custom_call.1} parent=0 // loop_footer
    %s26 = sadd.s32 1, %s22
  $region7: #{tpu_custom_call.1} parent=0 // loop_footer_branch
    %21 = sbr.rel target = $region3
  $region8: #{tpu_custom_call.1} parent=0 // loop_exit
    _

</llo_original>
